<compile_context>
chip_gen: v6e
topology: v6e:2x2x1
jax: 0.10.0
libtpu: 0.0.40
codegen_flags: <defaults>
</compile_context>

<pallas_src>
import functools
import math

import jax
import jax.numpy as jnp
from jax.experimental import pallas as pl
from jax.experimental.pallas import tpu as pltpu


# ---------------------------------------------------------------------------
# helpers
# ---------------------------------------------------------------------------
def _round_up(x, m):
    return -(-x // m) * m


# ---------------------------------------------------------------------------
# Pallas kernels
# ---------------------------------------------------------------------------
# --- single-block (whole problem VMEM-resident, no grid) --------------------
def _mm_single_kernel(a_ref, b_ref, sc_ref, sh_ref, o_ref, *, relu):
    acc = jnp.dot(a_ref[...], b_ref[...], preferred_element_type=jnp.float32)
    y = acc * sc_ref[...] + sh_ref[...]
    if relu:
        y = jnp.maximum(y, 0.0)
    o_ref[...] = y.astype(o_ref.dtype)


def _mm_single_res_kernel(a_ref, b_ref, sc_ref, sh_ref, r_ref, o_ref, *, relu):
    acc = jnp.dot(a_ref[...], b_ref[...], preferred_element_type=jnp.float32)
    y = acc * sc_ref[...] + sh_ref[...] + r_ref[...].astype(jnp.float32)
    if relu:
        y = jnp.maximum(y, 0.0)
    o_ref[...] = y.astype(o_ref.dtype)


# --- tiled fallback (K-accumulation grid) for large shapes ------------------
def _mm_tiled_kernel(a_ref, b_ref, sc_ref, sh_ref, o_ref, acc_ref, *, relu):
    @pl.when(pl.program_id(2) == 0)
    def _():
        acc_ref[...] = jnp.zeros_like(acc_ref)

    acc_ref[...] += jnp.dot(a_ref[...], b_ref[...],
                            preferred_element_type=jnp.float32)

    @pl.when(pl.program_id(2) == pl.num_programs(2) - 1)
    def _():
        y = acc_ref[...] * sc_ref[...] + sh_ref[...]
        if relu:
            y = jnp.maximum(y, 0.0)
        o_ref[...] = y.astype(o_ref.dtype)


def _mm_tiled_res_kernel(a_ref, b_ref, sc_ref, sh_ref, r_ref, o_ref, acc_ref,
                         *, relu):
    @pl.when(pl.program_id(2) == 0)
    def _():
        acc_ref[...] = jnp.zeros_like(acc_ref)

    acc_ref[...] += jnp.dot(a_ref[...], b_ref[...],
                            preferred_element_type=jnp.float32)

    @pl.when(pl.program_id(2) == pl.num_programs(2) - 1)
    def _():
        y = acc_ref[...] * sc_ref[...] + sh_ref[...] + \
            r_ref[...].astype(jnp.float32)
        if relu:
            y = jnp.maximum(y, 0.0)
        o_ref[...] = y.astype(o_ref.dtype)


def pallas_matmul_fused(a, b, scale, shift, residual=None, *, relu,
                        out_dtype=jnp.bfloat16):
    """(a @ b) * scale + shift (+ residual) per output column, optional ReLU.

    a, b are cast to bf16 (MXU-native); accumulation + epilogue stay in f32.
    """
    M, K = a.shape
    K2, N = b.shape
    assert K == K2
    a = a.astype(jnp.bfloat16)
    b = b.astype(jnp.bfloat16)
    scale = scale.astype(jnp.float32)
    shift = shift.astype(jnp.float32)
    has_res = residual is not None

    # -------- single-block path: whole matmul VMEM-resident -----------------
    Mp = _round_up(M, 16)          # bf16 packs 16 rows / sublane
    Kp = _round_up(K, 128)
    Np = _round_up(N, 128)         # lane-dense output stores
    vmem_bytes = (Mp * Kp * 2 + Kp * Np * 2 + Mp * Np * 2
                  + (Mp * Np * 2 if has_res else 0) + 8 * Np)
    if vmem_bytes <= 12 * 1024 * 1024:   # well under scoped VMEM on v5e/v6e/v7x
        a_p = jnp.pad(a, ((0, Mp - M), (0, Kp - K)))
        b_p = jnp.pad(b, ((0, Kp - K), (0, Np - N)))
        sc = jnp.pad(scale, (0, Np - N)).reshape(1, Np)
        sh = jnp.pad(shift, (0, Np - N)).reshape(1, Np)
        args = [a_p, b_p, sc, sh]
        if has_res:
            args.append(jnp.pad(residual.astype(jnp.bfloat16),
                                ((0, Mp - M), (0, Np - N))))
            kern = functools.partial(_mm_single_res_kernel, relu=relu)
        else:
            kern = functools.partial(_mm_single_kernel, relu=relu)
        out = pl.pallas_call(
            kern,
            out_shape=jax.ShapeDtypeStruct((Mp, Np), out_dtype),
            in_specs=[pl.BlockSpec(memory_space=pltpu.MemorySpace.VMEM)
                      for _ in args],
            out_specs=pl.BlockSpec(memory_space=pltpu.MemorySpace.VMEM),
        )(*args)
        return out[:M, :N]

    # -------- tiled fallback (not exercised at this model's sizes) ----------
    tm, tn, tk = 256, 256, 512
    Mp = _round_up(M, tm)
    Np = _round_up(N, tn)
    Kp = _round_up(K, tk)
    a_p = jnp.pad(a, ((0, Mp - M), (0, Kp - K)))
    b_p = jnp.pad(b, ((0, Kp - K), (0, Np - N)))
    sc = jnp.pad(scale, (0, Np - N)).reshape(1, Np)
    sh = jnp.pad(shift, (0, Np - N)).reshape(1, Np)
    in_specs = [pl.BlockSpec((tm, tk), lambda i, j, k: (i, k)),
                pl.BlockSpec((tk, tn), lambda i, j, k: (k, j)),
                pl.BlockSpec((1, tn), lambda i, j, k: (0, j)),
                pl.BlockSpec((1, tn), lambda i, j, k: (0, j))]
    args = [a_p, b_p, sc, sh]
    if has_res:
        args.append(jnp.pad(residual.astype(jnp.bfloat16),
                            ((0, Mp - M), (0, Np - N))))
        in_specs.append(pl.BlockSpec((tm, tn), lambda i, j, k: (i, j)))
        kern = functools.partial(_mm_tiled_res_kernel, relu=relu)
    else:
        kern = functools.partial(_mm_tiled_kernel, relu=relu)
    out = pl.pallas_call(
        kern,
        out_shape=jax.ShapeDtypeStruct((Mp, Np), out_dtype),
        grid_spec=pltpu.PrefetchScalarGridSpec(
            num_scalar_prefetch=0,
            grid=(Mp // tm, Np // tn, Kp // tk),
            in_specs=in_specs,
            out_specs=pl.BlockSpec((tm, tn), lambda i, j, k: (i, j)),
            scratch_shapes=[pltpu.VMEM((tm, tn), jnp.float32)]),
        compiler_params=pltpu.CompilerParams(
            dimension_semantics=("parallel", "parallel", "arbitrary")),
    )(*args)
    return out[:M, :N]


# ---------------------------------------------------------------------------
# Conv3d / ConvTranspose3d / MaxPool3d wrappers
# ---------------------------------------------------------------------------
@functools.partial(jax.jit, static_argnames=("relu", "stride", "padding"))
def conv3d_bn_act(x, w, scale, shift, residual=None, *, relu, stride, padding):
    """x: [N,T,H,W,Cin]; w: [kt,kh,kw,Cin,Cout]; per-Cout BN scale/shift.

    residual (optional): [N,To,Ho,Wo,Cout] added before the (fused) ReLU."""
    N, T, H, W, Cin = x.shape
    kt, kh, kw, _, Cout = w.shape
    st, shh, sww = stride
    pt, ph, pw = padding
    x = x.astype(jnp.bfloat16)

    if (kt, kh, kw) == (1, 1, 1) and (pt, ph, pw) == (0, 0, 0):
        # 1x1x1 conv: no im2col, just (strided) view + reshape.
        xs = x[:, ::st, ::shh, ::sww, :]
        _, To, Ho, Wo, _ = xs.shape
        a = xs.reshape(N * To * Ho * Wo, Cin)
    else:
        xp = jnp.pad(x, ((0, 0), (pt, pt), (ph, ph), (pw, pw), (0, 0)))
        To = (T + 2 * pt - kt) // st + 1
        Ho = (H + 2 * ph - kh) // shh + 1
        Wo = (W + 2 * pw - kw) // sww + 1
        patches = []
        for it in range(kt):
            for ih in range(kh):
                for iw in range(kw):
                    patches.append(
                        xp[:, it:it + To * st:st, ih:ih + Ho * shh:shh,
                           iw:iw + Wo * sww:sww, :])
        p = jnp.stack(patches, axis=4)                  # [N,To,Ho,Wo,K,Cin]
        a = p.reshape(N * To * Ho * Wo, kt * kh * kw * Cin)

    bmat = w.reshape(kt * kh * kw * Cin, Cout)
    res2d = None if residual is None else residual.reshape(-1, Cout)
    y = pallas_matmul_fused(a, bmat, scale, shift, res2d, relu=relu)
    return y.reshape(N, To, Ho, Wo, Cout)


@jax.jit
def deconv_bn_relu(x, w, scale, shift):
    """ConvTranspose3d with kernel=(r,1,1), stride=(r,1,1) + BN + ReLU.

    x: [N,T,H,W,Cin]; w: [Cin, r, Cout]."""
    N, T, H, W, Cin = x.shape
    r, Cout = w.shape[1], w.shape[2]
    y = pallas_matmul_fused(x.reshape(N * T * H * W, Cin),
                            w.reshape(Cin, r * Cout),
                            jnp.tile(scale, r), jnp.tile(shift, r), relu=True)
    y = y.reshape(N, T, H, W, r, Cout)
    y = jnp.transpose(y, (0, 1, 4, 2, 3, 5)).reshape(N, T * r, H, W, Cout)
    return y


@functools.partial(jax.jit, static_argnames=("kernel", "stride", "padding"))
def maxpool3d(x, kernel=(1, 3, 3), stride=(1, 2, 2), padding=(0, 1, 1)):
    """nn.MaxPool3d equivalent on NTHWC activations.

    Implemented as a fused pairwise jnp.maximum tree over strided views (per
    perf review) instead of a Pallas kernel: avoids materializing a 9x window
    stack in HBM for a purely memory-bound op."""
    N, T, H, W, C = x.shape
    kt, kh, kw = kernel
    st, sh, sw = stride
    pt, ph, pw = padding
    xp = jnp.pad(x, ((0, 0), (pt, pt), (ph, ph), (pw, pw), (0, 0)),
                 constant_values=-jnp.inf)
    To = (T + 2 * pt - kt) // st + 1
    Ho = (H + 2 * ph - kh) // sh + 1
    Wo = (W + 2 * pw - kw) // sw + 1
    out = None
    for it in range(kt):
        for ih in range(kh):
            for iw in range(kw):
                v = xp[:, it:it + To * st:st, ih:ih + Ho * sh:sh,
                       iw:iw + Wo * sw:sw, :]
                out = v if out is None else jnp.maximum(out, v)
    return out


# ---------------------------------------------------------------------------
# Parameter construction (deterministic, synthetic init)
# ---------------------------------------------------------------------------
class KeyGen:
    def __init__(self, seed):
        self._key = jax.random.PRNGKey(seed)

    def __call__(self):
        self._key, sub = jax.random.split(self._key)
        return sub


def _kaiming(key, shape, fan_in):
    return math.sqrt(2.0 / fan_in) * jax.random.normal(key, shape, jnp.float32)


def init_bn(c):
    return {"gamma": jnp.ones((c,), jnp.float32),
            "beta": jnp.zeros((c,), jnp.float32),
            "mean": jnp.zeros((c,), jnp.float32),
            "var": jnp.ones((c,), jnp.float32)}


def _bn_scale_shift(bn, eps=1e-5):
    scale = bn["gamma"] / jnp.sqrt(bn["var"] + eps)
    shift = bn["beta"] - bn["mean"] * scale
    return scale, shift


def init_conv_module(kg, cin, cout, kernel, stride, padding,
                     with_bn=True, act=True):
    fan_in = kernel[0] * kernel[1] * kernel[2] * cin
    return {"w": _kaiming(kg(), tuple(kernel) + (cin, cout), fan_in),
            "stride": tuple(stride), "padding": tuple(padding),
            "bn": init_bn(cout) if with_bn else None, "act": bool(act)}


def apply_conv_module(p, x, residual=None):
    cout = p["w"].shape[-1]
    if p["bn"] is not None:
        scale, shift = _bn_scale_shift(p["bn"])
    else:
        scale = jnp.ones((cout,), jnp.float32)
        shift = jnp.zeros((cout,), jnp.float32)
    # when a residual is supplied, the block-level add+ReLU is fused into the
    # matmul epilogue (Bottleneck3d semantics: relu(bn(conv(x)) + identity)).
    relu = bool(p["act"]) or (residual is not None)
    return conv3d_bn_act(x, p["w"], scale, shift, residual,
                         relu=relu, stride=p["stride"], padding=p["padding"])


# ----- Bottleneck3d (pytorch style, inflate_style='3x1x1') -----------------
def init_bottleneck(kg, inplanes, planes, spatial_stride, temporal_stride,
                    inflate):
    exp = 4
    if inflate:
        k1, p1 = (3, 1, 1), (1, 0, 0)
    else:
        k1, p1 = (1, 1, 1), (0, 0, 0)
    blk = {
        "conv1": init_conv_module(kg, inplanes, planes, k1, (1, 1, 1), p1,
                                  True, True),
        "conv2": init_conv_module(kg, planes, planes, (1, 3, 3),
                                  (temporal_stride, spatial_stride,
                                   spatial_stride), (0, 1, 1), True, True),
        "conv3": init_conv_module(kg, planes, planes * exp, (1, 1, 1),
                                  (1, 1, 1), (0, 0, 0), True, False),
        "downsample": None,
    }
    if spatial_stride != 1 or inplanes != planes * exp:
        blk["downsample"] = init_conv_module(
            kg, inplanes, planes * exp, (1, 1, 1),
            (temporal_stride, spatial_stride, spatial_stride), (0, 0, 0),
            True, False)
    return blk


def apply_bottleneck(blk, x):
    out = apply_conv_module(blk["conv1"], x)
    out = apply_conv_module(blk["conv2"], out)
    identity = x if blk["downsample"] is None else \
        apply_conv_module(blk["downsample"], x)
    # conv3 (1x1x1 conv + BN) with residual add + ReLU fused in its epilogue
    return apply_conv_module(blk["conv3"], out, residual=identity)


def init_res_layer(kg, inplanes, planes, num_blocks, spatial_stride,
                   temporal_stride, inflate):
    blocks = [init_bottleneck(kg, inplanes, planes, spatial_stride,
                              temporal_stride, inflate)]
    for _ in range(num_blocks - 1):
        blocks.append(init_bottleneck(kg, planes * 4, planes, 1, 1, inflate))
    return blocks


def apply_res_layer(blocks, x):
    for blk in blocks:
        x = apply_bottleneck(blk, x)
    return x


# ----- ResNet3dPathway ------------------------------------------------------
def init_pathway(kg, cfg):
    exp = 4
    base = cfg["base_channels"]
    ns = cfg["num_stages"]
    conv1_pad = tuple((k - 1) // 2 for k in cfg["conv1_kernel"])
    c1t, c1s = cfg["conv1_stride"]
    p1t, p1s = cfg["pool1_stride"]
    path = {
        "conv1": init_conv_module(kg, cfg["in_channels"], base,
                                  cfg["conv1_kernel"], (c1t, c1s, c1s),
                                  conv1_pad, True, True),
        "pool1_stride": (p1t, p1s, p1s),
        "layers": [],
        "laterals": {},
    }
    stage_out = [base * (2 ** i) * exp for i in range(ns)]
    lat_out = {}
    for i in range(ns - 1):                     # layer{i+1}_lateral
        if cfg["lateral"] and cfg["lateral_activate"][i + 1]:
            inpl = stage_out[i]
            if cfg["lateral_inv"]:              # DeConvModule (pose pathway)
                cin = inpl * cfg["channel_ratio"]
                cout = cin // cfg["lateral_infl"]
                path["laterals"][i + 1] = {
                    "type": "deconv",
                    "w": _kaiming(kg(), (cin, cfg["speed_ratio"], cout), cin),
                    "bn": init_bn(cout)}
            else:                               # ConvModule, no BN / no act
                cin = inpl // cfg["channel_ratio"]
                cout = inpl * cfg["lateral_infl"] // cfg["channel_ratio"]
                fk = cfg["fusion_kernel"]
                path["laterals"][i + 1] = {
                    "type": "conv",
                    "module": init_conv_module(
                        kg, cin, cout, (fk, 1, 1), (cfg["speed_ratio"], 1, 1),
                        ((fk - 1) // 2, 0, 0), with_bn=False, act=False)}
            lat_out[i + 1] = cout
    inplanes = base
    for i in range(ns):
        planes = base * (2 ** i)
        in_ch = inplanes + lat_out.get(i, 0)    # concat from layer{i}_lateral
        path["layers"].append(
            init_res_layer(kg, in_ch, planes, cfg["stage_blocks"][i],
                           cfg["spatial_strides"][i],
                           cfg["temporal_strides"][i], cfg["inflates"][i]))
        inplanes = planes * exp
    return path


def apply_lateral(lat, x):
    if lat["type"] == "conv":
        return apply_conv_module(lat["module"], x)
    scale, shift = _bn_scale_shift(lat["bn"])
    return deconv_bn_relu(x, lat["w"], scale, shift)


# ----- RGBPoseConv3D --------------------------------------------------------
def init_rgbposeconv3d(seed=0, speed_ratio=4, channel_ratio=4,
                       rgb_base_channels=16, pose_base_channels=8,
                       rgb_stage_blocks=(3, 4, 6, 3),
                       pose_stage_blocks=(4, 6, 3)):
    # base_channels are scaled down (64->16, 32->8) for a small synthetic model;
    # all channel ratios / lateral arithmetic match the original config.
    kg = KeyGen(seed)
    rgb_cfg = dict(in_channels=3, base_channels=rgb_base_channels, num_stages=4,
                   stage_blocks=rgb_stage_blocks,
                   spatial_strides=(1, 2, 2, 2), temporal_strides=(1, 1, 1, 1),
                   inflates=(0, 0, 1, 1), conv1_kernel=(1, 7, 7),
                   conv1_stride=(1, 2), pool1_stride=(1, 2),
                   lateral=True, lateral_inv=False, lateral_infl=1,
                   lateral_activate=(0, 0, 1, 1),
                   speed_ratio=speed_ratio, channel_ratio=channel_ratio,
                   fusion_kernel=7)
    pose_cfg = dict(in_channels=17, base_channels=pose_base_channels,
                    num_stages=3, stage_blocks=pose_stage_blocks,
                    spatial_strides=(2, 2, 2), temporal_strides=(1, 1, 1),
                    inflates=(0, 1, 1), conv1_kernel=(1, 7, 7),
                    conv1_stride=(1, 1), pool1_stride=(1, 1),
                    lateral=True, lateral_inv=True, lateral_infl=16,
                    lateral_activate=(0, 1, 1),
                    speed_ratio=speed_ratio, channel_ratio=channel_ratio,
                    fusion_kernel=7)
    return {"rgb": init_pathway(kg, rgb_cfg),
            "pose": init_pathway(kg, pose_cfg)}


def rgbposeconv3d_forward(params, imgs, heatmap_imgs):
    """Eval-mode forward of RGBPoseConv3D.

    imgs: [N, 3, T, H, W] (slow RGB), heatmap_imgs: [N, 17, 4*T, H/4, W/4]."""
    rgb, pose = params["rgb"], params["pose"]
    x_rgb = jnp.transpose(imgs, (0, 2, 3, 4, 1)).astype(jnp.bfloat16)
    x_pose = jnp.transpose(heatmap_imgs, (0, 2, 3, 4, 1)).astype(jnp.bfloat16)

    x_rgb = apply_conv_module(rgb["conv1"], x_rgb)
    x_rgb = maxpool3d(x_rgb, kernel=(1, 3, 3), stride=rgb["pool1_stride"],
                      padding=(0, 1, 1))
    x_pose = apply_conv_module(pose["conv1"], x_pose)
    x_pose = maxpool3d(x_pose, kernel=(1, 3, 3), stride=pose["pool1_stride"],
                       padding=(0, 1, 1))

    x_rgb = apply_res_layer(rgb["layers"][0], x_rgb)
    x_rgb = apply_res_layer(rgb["layers"][1], x_rgb)
    x_pose = apply_res_layer(pose["layers"][0], x_pose)

    if 2 in rgb["laterals"]:                 # rgb_path.layer2_lateral
        x_pose_lateral = apply_lateral(rgb["laterals"][2], x_pose)
    if 1 in pose["laterals"]:                # pose_path.layer1_lateral
        x_rgb_lateral = apply_lateral(pose["laterals"][1], x_rgb)
    if 2 in rgb["laterals"]:
        x_rgb = jnp.concatenate([x_rgb, x_pose_lateral], axis=-1)
    if 1 in pose["laterals"]:
        x_pose = jnp.concatenate([x_pose, x_rgb_lateral], axis=-1)

    x_rgb = apply_res_layer(rgb["layers"][2], x_rgb)
    x_pose = apply_res_layer(pose["layers"][1], x_pose)

    if 3 in rgb["laterals"]:                 # rgb_path.layer3_lateral
        x_pose_lateral = apply_lateral(rgb["laterals"][3], x_pose)
    if 2 in pose["laterals"]:                # pose_path.layer2_lateral
        x_rgb_lateral = apply_lateral(pose["laterals"][2], x_rgb)
    if 3 in rgb["laterals"]:
        x_rgb = jnp.concatenate([x_rgb, x_pose_lateral], axis=-1)
    if 2 in pose["laterals"]:
        x_pose = jnp.concatenate([x_pose, x_rgb_lateral], axis=-1)

    x_rgb = apply_res_layer(rgb["layers"][3], x_rgb)
    x_pose = apply_res_layer(pose["layers"][2], x_pose)

    # back to PyTorch NCTHW, float32
    return (jnp.transpose(x_rgb, (0, 4, 1, 2, 3)).astype(jnp.float32),
            jnp.transpose(x_pose, (0, 4, 1, 2, 3)).astype(jnp.float32))


# ---------------------------------------------------------------------------
if __name__ == "__main__":
    params = init_rgbposeconv3d(seed=0)

    key = jax.random.PRNGKey(0)
    k1, k2 = jax.random.split(key)
    # slow RGB clip: N=2, C=3, T=2, H=W=32 ; fast pose heatmaps: T=8, H=W=8
    imgs = jax.random.normal(k1, (2, 3, 2, 32, 32), jnp.float32)
    heatmap_imgs = jax.random.normal(k2, (2, 17, 8, 8, 8), jnp.float32)

    x_rgb, x_pose = rgbposeconv3d_forward(params, imgs, heatmap_imgs)
    x_rgb, x_pose = jax.block_until_ready((x_rgb, x_pose))

    assert x_rgb.shape == (2, 512, 2, 1, 1), x_rgb.shape
    assert x_pose.shape == (2, 128, 8, 1, 1), x_pose.shape
    assert bool(jnp.all(jnp.isfinite(x_rgb))) and bool(jnp.all(jnp.isfinite(x_pose)))
    print("KERNEL_OK")
</pallas_src>

<mosaic_0001>
module attributes {stable_mosaic.version = 11 : i64} {
  func.func @_mm_single_kernel(%arg0: memref<1024x256xbf16, #tpu.memory_space<vmem>>, %arg1: memref<256x128xbf16, #tpu.memory_space<vmem>>, %arg2: memref<1x128xf32, #tpu.memory_space<vmem>>, %arg3: memref<1x128xf32, #tpu.memory_space<vmem>>, %arg4: memref<1024x128xbf16, #tpu.memory_space<vmem>>) attributes {dimension_semantics = [], scalar_prefetch = 0 : i64, scratch_operands = 0 : i64, tpu.core_type = #tpu.core_type<tc>} {
    %c0 = arith.constant 0 : index
    %c0_0 = arith.constant 0 : index
    %0 = vector.load %arg0[%c0, %c0_0] : memref<1024x256xbf16, #tpu.memory_space<vmem>>, vector<1024x256xbf16>
    %c0_1 = arith.constant 0 : index
    %c0_2 = arith.constant 0 : index
    %1 = vector.load %arg1[%c0_1, %c0_2] : memref<256x128xbf16, #tpu.memory_space<vmem>>, vector<256x128xbf16>
    %cst = arith.constant dense<0.000000e+00> : vector<1024x128xf32>
    %2 = tpu.matmul %0, %1, %cst {dimension_numbers = #tpu.dot_dimension_numbers<[1], [0], [0], [1], [0, 0, 1, 1], [], []>} : vector<1024x256xbf16>, vector<256x128xbf16>, vector<1024x128xf32> -> vector<1024x128xf32>
    %c0_3 = arith.constant 0 : index
    %c0_4 = arith.constant 0 : index
    %3 = vector.load %arg2[%c0_3, %c0_4] : memref<1x128xf32, #tpu.memory_space<vmem>>, vector<1x128xf32>
    %4 = vector.broadcast %3 : vector<1x128xf32> to vector<1024x128xf32>
    %5 = arith.mulf %2, %4 : vector<1024x128xf32>
    %c0_5 = arith.constant 0 : index
    %c0_6 = arith.constant 0 : index
    %6 = vector.load %arg3[%c0_5, %c0_6] : memref<1x128xf32, #tpu.memory_space<vmem>>, vector<1x128xf32>
    %7 = vector.broadcast %6 : vector<1x128xf32> to vector<1024x128xf32>
    %8 = arith.addf %5, %7 : vector<1024x128xf32>
    %cst_7 = arith.constant 0.000000e+00 : f32
    %9 = vector.broadcast %cst_7 : f32 to vector<1024x128xf32>
    %10 = arith.maximumf %8, %9 : vector<1024x128xf32>
    %11 = arith.truncf %10 : vector<1024x128xf32> to vector<1024x128xbf16>
    %c0_8 = arith.constant 0 : index
    %c0_9 = arith.constant 0 : index
    %12 = vector.load %arg4[%c0_8, %c0_9] : memref<1024x128xbf16, #tpu.memory_space<vmem>>, vector<1024x128xbf16>
    tpu.vector_store %arg4[%c0_8, %c0_9], %11 {strides = array<i32>} : memref<1024x128xbf16, #tpu.memory_space<vmem>>, vector<1024x128xbf16>,
    return
  }
}

</mosaic_0001>

<llo_original>
// kernel: conv3d_bn_act.1
$region0: #{conv3d_bn_act.1}
  #allocation0 [shape = 'u32[]', space=smem, size = 0x4, offset = 0x4, fixed_abs, tag = 'smem constant byte address 0x4 - core index']
  #allocation1 [shape = 'u32[144,128]{1,0:T(1,128)}', space=vmem, size = 0x12000, scoped, tag = 'internal scratch']
  %s0 = inlined_call_operand.vmem [shape: bf16[1024,256], index: 0, kind: input, shape index: {}]
  %s1 = inlined_call_operand.vmem [shape: bf16[256,128], index: 1, kind: input, shape index: {}]
  %s2 = inlined_call_operand.vmem [shape: f32[1,128], index: 2, kind: input, shape index: {}]
  %s3 = inlined_call_operand.vmem [shape: f32[1,128], index: 3, kind: input, shape index: {}]
  %s4 = inlined_call_operand.hbm [shape: bf16[1024,128], index: 4, kind: output, shape index: {}]
  %s5 = sld [smem:[#allocation0]]
  $region26: #{conv3d_bn_act.1} parent=0
    _
  %s7 = ssub.s32 1, %s5
  %s8 = scalar_select 0, %s7, %s5
  $region1: #{conv3d_bn_act.1} parent=0
    #allocation2 [shape = 'u8[262144]{0}', space=vmem, size = 0x40000, scoped, tag = 'output window, operand 0, single buffered']
    #allocation3 [shape = 's32[1]{0}', space=sflag, size = 0x4, scoped, tag = 'scoped memory for conv3d_bn_act.1']
    %9 = vsyncpa [#allocation3], 0
    // Predicated region
    $region2: #{conv3d_bn_act.1} parent=1 // pred_check
      _
    $region3: #{conv3d_bn_act.1} parent=1 // pred_check_branch
      %11 = sbr.rel (0) target = $region5
    $region4: #{conv3d_bn_act.1} parent=1 // pred_region
      _
    $region5: #{conv3d_bn_act.1} parent=1 // pred_fallthru
      _
    // Predicated region
    $region6: #{conv3d_bn_act.1} parent=1 // pred_check
      _
    $region7: #{conv3d_bn_act.1} parent=1 // pred_check_branch
      %13 = sbr.rel (0) target = $region9
    $region8: #{conv3d_bn_act.1} parent=1 // pred_region
      _
    $region9: #{conv3d_bn_act.1} parent=1 // pred_fallthru
      _
    // Predicated region
    $region10: #{conv3d_bn_act.1} parent=1 // pred_check
      _
    $region11: #{conv3d_bn_act.1} parent=1 // pred_check_branch
      %15 = sbr.rel (0) target = $region13
    $region12: #{conv3d_bn_act.1} parent=1 // pred_region
      _
    $region13: #{conv3d_bn_act.1} parent=1 // pred_fallthru
      _
    // Predicated region
    $region14: #{conv3d_bn_act.1} parent=1 // pred_check
      _
    $region15: #{conv3d_bn_act.1} parent=1 // pred_check_branch
      %17 = sbr.rel (0) target = $region17
    $region16: #{conv3d_bn_act.1} parent=1 // pred_region
      _
    $region17: #{conv3d_bn_act.1} parent=1 // pred_fallthru
      _
    %v19 = vld [vmem:[%s0] sm:$0xff]
    %v20 = vld [vmem:[%s0 + $0x8] sm:$0xff]
    %v21 = vld [vmem:[%s0 + $0x10] sm:$0xff]
    %v22 = vld [vmem:[%s0 + $0x18] sm:$0xff]
    %v23 = vld [vmem:[%s0 + $0x20] sm:$0xff]
    %v24 = vld [vmem:[%s0 + $0x28] sm:$0xff]
    %v25 = vld [vmem:[%s0 + $0x30] sm:$0xff]
    %v26 = vld [vmem:[%s0 + $0x38] sm:$0xff]
    %v27 = vld [vmem:[%s0 + $0x40] sm:$0xff]
    %v28 = vld [vmem:[%s0 + $0x48] sm:$0xff]
    %v29 = vld [vmem:[%s0 + $0x50] sm:$0xff]
    %v30 = vld [vmem:[%s0 + $0x58] sm:$0xff]
    %v31 = vld [vmem:[%s0 + $0x60] sm:$0xff]
    %v32 = vld [vmem:[%s0 + $0x68] sm:$0xff]
    %v33 = vld [vmem:[%s0 + $0x70] sm:$0xff]
    %v34 = vld [vmem:[%s0 + $0x78] sm:$0xff]
    %v35 = vld [vmem:[%s0 + $0x80] sm:$0xff]
    %v36 = vld [vmem:[%s0 + $0x88] sm:$0xff]
    %v37 = vld [vmem:[%s0 + $0x90] sm:$0xff]
    %v38 = vld [vmem:[%s0 + $0x98] sm:$0xff]
    %v39 = vld [vmem:[%s0 + $0xa0] sm:$0xff]
    %v40 = vld [vmem:[%s0 + $0xa8] sm:$0xff]
    %v41 = vld [vmem:[%s0 + $0xb0] sm:$0xff]
    %v42 = vld [vmem:[%s0 + $0xb8] sm:$0xff]
    %v43 = vld [vmem:[%s0 + $0xc0] sm:$0xff]
    %v44 = vld [vmem:[%s0 + $0xc8] sm:$0xff]
    %v45 = vld [vmem:[%s0 + $0xd0] sm:$0xff]
    %v46 = vld [vmem:[%s0 + $0xd8] sm:$0xff]
    %v47 = vld [vmem:[%s0 + $0xe0] sm:$0xff]
    %v48 = vld [vmem:[%s0 + $0xe8] sm:$0xff]
    %v49 = vld [vmem:[%s0 + $0xf0] sm:$0xff]
    %v50 = vld [vmem:[%s0 + $0xf8] sm:$0xff]
    %v51 = vld [vmem:[%s0 + $0x100] sm:$0xff]
    %v52 = vld [vmem:[%s0 + $0x108] sm:$0xff]
    %v53 = vld [vmem:[%s0 + $0x110] sm:$0xff]
    %v54 = vld [vmem:[%s0 + $0x118] sm:$0xff]
    %v55 = vld [vmem:[%s0 + $0x120] sm:$0xff]
    %v56 = vld [vmem:[%s0 + $0x128] sm:$0xff]
    %v57 = vld [vmem:[%s0 + $0x130] sm:$0xff]
    %v58 = vld [vmem:[%s0 + $0x138] sm:$0xff]
    %v59 = vld [vmem:[%s0 + $0x140] sm:$0xff]
    %v60 = vld [vmem:[%s0 + $0x148] sm:$0xff]
    %v61 = vld [vmem:[%s0 + $0x150] sm:$0xff]
    %v62 = vld [vmem:[%s0 + $0x158] sm:$0xff]
    %v63 = vld [vmem:[%s0 + $0x160] sm:$0xff]
    %v64 = vld [vmem:[%s0 + $0x168] sm:$0xff]
    %v65 = vld [vmem:[%s0 + $0x170] sm:$0xff]
    %v66 = vld [vmem:[%s0 + $0x178] sm:$0xff]
    %v67 = vld [vmem:[%s0 + $0x180] sm:$0xff]
    %v68 = vld [vmem:[%s0 + $0x188] sm:$0xff]
    %v69 = vld [vmem:[%s0 + $0x190] sm:$0xff]
    %v70 = vld [vmem:[%s0 + $0x198] sm:$0xff]
    %v71 = vld [vmem:[%s0 + $0x1a0] sm:$0xff]
    %v72 = vld [vmem:[%s0 + $0x1a8] sm:$0xff]
    %v73 = vld [vmem:[%s0 + $0x1b0] sm:$0xff]
    %v74 = vld [vmem:[%s0 + $0x1b8] sm:$0xff]
    %v75 = vld [vmem:[%s0 + $0x1c0] sm:$0xff]
    %v76 = vld [vmem:[%s0 + $0x1c8] sm:$0xff]
    %v77 = vld [vmem:[%s0 + $0x1d0] sm:$0xff]
    %v78 = vld [vmem:[%s0 + $0x1d8] sm:$0xff]
    %v79 = vld [vmem:[%s0 + $0x1e0] sm:$0xff]
    %v80 = vld [vmem:[%s0 + $0x1e8] sm:$0xff]
    %v81 = vld [vmem:[%s0 + $0x1f0] sm:$0xff]
    %v82 = vld [vmem:[%s0 + $0x1f8] sm:$0xff]
    %v83 = vld [vmem:[%s0 + $0x200] sm:$0xff]
    %v84 = vld [vmem:[%s0 + $0x208] sm:$0xff]
    %v85 = vld [vmem:[%s0 + $0x210] sm:$0xff]
    %v86 = vld [vmem:[%s0 + $0x218] sm:$0xff]
    %v87 = vld [vmem:[%s0 + $0x220] sm:$0xff]
    %v88 = vld [vmem:[%s0 + $0x228] sm:$0xff]
    %v89 = vld [vmem:[%s0 + $0x230] sm:$0xff]
    %v90 = vld [vmem:[%s0 + $0x238] sm:$0xff]
    %v91 = vld [vmem:[%s0 + $0x240] sm:$0xff]
    %v92 = vld [vmem:[%s0 + $0x248] sm:$0xff]
    %v93 = vld [vmem:[%s0 + $0x250] sm:$0xff]
    %v94 = vld [vmem:[%s0 + $0x258] sm:$0xff]
    %v95 = vld [vmem:[%s0 + $0x260] sm:$0xff]
    %v96 = vld [vmem:[%s0 + $0x268] sm:$0xff]
    %v97 = vld [vmem:[%s0 + $0x270] sm:$0xff]
    %v98 = vld [vmem:[%s0 + $0x278] sm:$0xff]
    %v99 = vld [vmem:[%s0 + $0x280] sm:$0xff]
    %v100 = vld [vmem:[%s0 + $0x288] sm:$0xff]
    %v101 = vld [vmem:[%s0 + $0x290] sm:$0xff]
    %v102 = vld [vmem:[%s0 + $0x298] sm:$0xff]
    %v103 = vld [vmem:[%s0 + $0x2a0] sm:$0xff]
    %v104 = vld [vmem:[%s0 + $0x2a8] sm:$0xff]
    %v105 = vld [vmem:[%s0 + $0x2b0] sm:$0xff]
    %v106 = vld [vmem:[%s0 + $0x2b8] sm:$0xff]
    %v107 = vld [vmem:[%s0 + $0x2c0] sm:$0xff]
    %v108 = vld [vmem:[%s0 + $0x2c8] sm:$0xff]
    %v109 = vld [vmem:[%s0 + $0x2d0] sm:$0xff]
    %v110 = vld [vmem:[%s0 + $0x2d8] sm:$0xff]
    %v111 = vld [vmem:[%s0 + $0x2e0] sm:$0xff]
    %v112 = vld [vmem:[%s0 + $0x2e8] sm:$0xff]
    %v113 = vld [vmem:[%s0 + $0x2f0] sm:$0xff]
    %v114 = vld [vmem:[%s0 + $0x2f8] sm:$0xff]
    %v115 = vld [vmem:[%s0 + $0x300] sm:$0xff]
    %v116 = vld [vmem:[%s0 + $0x308] sm:$0xff]
    %v117 = vld [vmem:[%s0 + $0x310] sm:$0xff]
    %v118 = vld [vmem:[%s0 + $0x318] sm:$0xff]
    %v119 = vld [vmem:[%s0 + $0x320] sm:$0xff]
    %v120 = vld [vmem:[%s0 + $0x328] sm:$0xff]
    %v121 = vld [vmem:[%s0 + $0x330] sm:$0xff]
    %v122 = vld [vmem:[%s0 + $0x338] sm:$0xff]
    %v123 = vld [vmem:[%s0 + $0x340] sm:$0xff]
    %v124 = vld [vmem:[%s0 + $0x348] sm:$0xff]
    %v125 = vld [vmem:[%s0 + $0x350] sm:$0xff]
    %v126 = vld [vmem:[%s0 + $0x358] sm:$0xff]
    %v127 = vld [vmem:[%s0 + $0x360] sm:$0xff]
    %v128 = vld [vmem:[%s0 + $0x368] sm:$0xff]
    %v129 = vld [vmem:[%s0 + $0x370] sm:$0xff]
    %v130 = vld [vmem:[%s0 + $0x378] sm:$0xff]
    %v131 = vld [vmem:[%s0 + $0x380] sm:$0xff]
    %v132 = vld [vmem:[%s0 + $0x388] sm:$0xff]
    %v133 = vld [vmem:[%s0 + $0x390] sm:$0xff]
    %v134 = vld [vmem:[%s0 + $0x398] sm:$0xff]
    %v135 = vld [vmem:[%s0 + $0x3a0] sm:$0xff]
    %v136 = vld [vmem:[%s0 + $0x3a8] sm:$0xff]
    %v137 = vld [vmem:[%s0 + $0x3b0] sm:$0xff]
    %v138 = vld [vmem:[%s0 + $0x3b8] sm:$0xff]
    %v139 = vld [vmem:[%s0 + $0x3c0] sm:$0xff]
    %v140 = vld [vmem:[%s0 + $0x3c8] sm:$0xff]
    %v141 = vld [vmem:[%s0 + $0x3d0] sm:$0xff]
    %v142 = vld [vmem:[%s0 + $0x3d8] sm:$0xff]
    %v143 = vld [vmem:[%s0 + $0x3e0] sm:$0xff]
    %v144 = vld [vmem:[%s0 + $0x3e8] sm:$0xff]
    %v145 = vld [vmem:[%s0 + $0x3f0] sm:$0xff]
    %v146 = vld [vmem:[%s0 + $0x3f8] sm:$0xff]
    %v147 = vld [vmem:[%s1] sm:$0xf]
    %v148 = vld [vmem:[%s1 + $0x4] sm:$0xf]
    %v149 = vld [vmem:[%s1 + $0x8] sm:$0xf]
    %v150 = vld [vmem:[%s1 + $0xc] sm:$0xf]
    %v151 = vld [vmem:[%s1 + $0x10] sm:$0xf]
    %v152 = vld [vmem:[%s1 + $0x14] sm:$0xf]
    %v153 = vld [vmem:[%s1 + $0x18] sm:$0xf]
    %v154 = vld [vmem:[%s1 + $0x1c] sm:$0xf]
    %v155 = vld [vmem:[%s1 + $0x20] sm:$0xf]
    %v156 = vld [vmem:[%s1 + $0x24] sm:$0xf]
    %v157 = vld [vmem:[%s1 + $0x28] sm:$0xf]
    %v158 = vld [vmem:[%s1 + $0x2c] sm:$0xf]
    %v159 = vld [vmem:[%s1 + $0x30] sm:$0xf]
    %v160 = vld [vmem:[%s1 + $0x34] sm:$0xf]
    %v161 = vld [vmem:[%s1 + $0x38] sm:$0xf]
    %v162 = vld [vmem:[%s1 + $0x3c] sm:$0xf]
    %v163 = vld [vmem:[%s1 + $0x40] sm:$0xf]
    %v164 = vld [vmem:[%s1 + $0x44] sm:$0xf]
    %v165 = vld [vmem:[%s1 + $0x48] sm:$0xf]
    %v166 = vld [vmem:[%s1 + $0x4c] sm:$0xf]
    %v167 = vld [vmem:[%s1 + $0x50] sm:$0xf]
    %v168 = vld [vmem:[%s1 + $0x54] sm:$0xf]
    %v169 = vld [vmem:[%s1 + $0x58] sm:$0xf]
    %v170 = vld [vmem:[%s1 + $0x5c] sm:$0xf]
    %v171 = vld [vmem:[%s1 + $0x60] sm:$0xf]
    %v172 = vld [vmem:[%s1 + $0x64] sm:$0xf]
    %v173 = vld [vmem:[%s1 + $0x68] sm:$0xf]
    %v174 = vld [vmem:[%s1 + $0x6c] sm:$0xf]
    %v175 = vld [vmem:[%s1 + $0x70] sm:$0xf]
    %v176 = vld [vmem:[%s1 + $0x74] sm:$0xf]
    %v177 = vld [vmem:[%s1 + $0x78] sm:$0xf]
    %v178 = vld [vmem:[%s1 + $0x7c] sm:$0xf]
    %v307 = vunpack.c.l.b16 %v19
    %v308 = vunpack.c.h.b16 %v19
    %v309 = vunpack.c.l.b16 %v20
    %v310 = vunpack.c.h.b16 %v20
    %v311 = vunpack.c.l.b16 %v21
    %v312 = vunpack.c.h.b16 %v21
    %v313 = vunpack.c.l.b16 %v22
    %v314 = vunpack.c.h.b16 %v22
    %v315 = vunpack.c.l.b16 %v23
    %v316 = vunpack.c.h.b16 %v23
    %v317 = vunpack.c.l.b16 %v24
    %v318 = vunpack.c.h.b16 %v24
    %v319 = vunpack.c.l.b16 %v25
    %v320 = vunpack.c.h.b16 %v25
    %v321 = vunpack.c.l.b16 %v26
    %v322 = vunpack.c.h.b16 %v26
    %v323 = vunpack.c.l.b16 %v27
    %v324 = vunpack.c.h.b16 %v27
    %v325 = vunpack.c.l.b16 %v28
    %v326 = vunpack.c.h.b16 %v28
    %v327 = vunpack.c.l.b16 %v29
    %v328 = vunpack.c.h.b16 %v29
    %v329 = vunpack.c.l.b16 %v30
    %v330 = vunpack.c.h.b16 %v30
    %v331 = vunpack.c.l.b16 %v31
    %v332 = vunpack.c.h.b16 %v31
    %v333 = vunpack.c.l.b16 %v32
    %v334 = vunpack.c.h.b16 %v32
    %v335 = vunpack.c.l.b16 %v33
    %v336 = vunpack.c.h.b16 %v33
    %v337 = vunpack.c.l.b16 %v34
    %v338 = vunpack.c.h.b16 %v34
    %v339 = vunpack.c.l.b16 %v35
    %v340 = vunpack.c.h.b16 %v35
    %v341 = vunpack.c.l.b16 %v36
    %v342 = vunpack.c.h.b16 %v36
    %v343 = vunpack.c.l.b16 %v37
    %v344 = vunpack.c.h.b16 %v37
    %v345 = vunpack.c.l.b16 %v38
    %v346 = vunpack.c.h.b16 %v38
    %v347 = vunpack.c.l.b16 %v39
    %v348 = vunpack.c.h.b16 %v39
    %v349 = vunpack.c.l.b16 %v40
    %v350 = vunpack.c.h.b16 %v40
    %v351 = vunpack.c.l.b16 %v41
    %v352 = vunpack.c.h.b16 %v41
    %v353 = vunpack.c.l.b16 %v42
    %v354 = vunpack.c.h.b16 %v42
    %v355 = vunpack.c.l.b16 %v43
    %v356 = vunpack.c.h.b16 %v43
    %v357 = vunpack.c.l.b16 %v44
    %v358 = vunpack.c.h.b16 %v44
    %v359 = vunpack.c.l.b16 %v45
    %v360 = vunpack.c.h.b16 %v45
    %v361 = vunpack.c.l.b16 %v46
    %v362 = vunpack.c.h.b16 %v46
    %v363 = vunpack.c.l.b16 %v47
    %v364 = vunpack.c.h.b16 %v47
    %v365 = vunpack.c.l.b16 %v48
    %v366 = vunpack.c.h.b16 %v48
    %v367 = vunpack.c.l.b16 %v49
    %v368 = vunpack.c.h.b16 %v49
    %v369 = vunpack.c.l.b16 %v50
    %v370 = vunpack.c.h.b16 %v50
    %v371 = vunpack.c.l.b16 %v51
    %v372 = vunpack.c.h.b16 %v51
    %v373 = vunpack.c.l.b16 %v52
    %v374 = vunpack.c.h.b16 %v52
    %v375 = vunpack.c.l.b16 %v53
    %v376 = vunpack.c.h.b16 %v53
    %v377 = vunpack.c.l.b16 %v54
    %v378 = vunpack.c.h.b16 %v54
    %v379 = vunpack.c.l.b16 %v55
    %v380 = vunpack.c.h.b16 %v55
    %v381 = vunpack.c.l.b16 %v56
    %v382 = vunpack.c.h.b16 %v56
    %v383 = vunpack.c.l.b16 %v57
    %v384 = vunpack.c.h.b16 %v57
    %v385 = vunpack.c.l.b16 %v58
    %v386 = vunpack.c.h.b16 %v58
    %v387 = vunpack.c.l.b16 %v59
    %v388 = vunpack.c.h.b16 %v59
    %v389 = vunpack.c.l.b16 %v60
    %v390 = vunpack.c.h.b16 %v60
    %v391 = vunpack.c.l.b16 %v61
    %v392 = vunpack.c.h.b16 %v61
    %v393 = vunpack.c.l.b16 %v62
    %v394 = vunpack.c.h.b16 %v62
    %v395 = vunpack.c.l.b16 %v63
    %v396 = vunpack.c.h.b16 %v63
    %v397 = vunpack.c.l.b16 %v64
    %v398 = vunpack.c.h.b16 %v64
    %v399 = vunpack.c.l.b16 %v65
    %v400 = vunpack.c.h.b16 %v65
    %v401 = vunpack.c.l.b16 %v66
    %v402 = vunpack.c.h.b16 %v66
    %v403 = vunpack.c.l.b16 %v67
    %v404 = vunpack.c.h.b16 %v67
    %v405 = vunpack.c.l.b16 %v68
    %v406 = vunpack.c.h.b16 %v68
    %v407 = vunpack.c.l.b16 %v69
    %v408 = vunpack.c.h.b16 %v69
    %v409 = vunpack.c.l.b16 %v70
    %v410 = vunpack.c.h.b16 %v70
    %v411 = vunpack.c.l.b16 %v71
    %v412 = vunpack.c.h.b16 %v71
    %v413 = vunpack.c.l.b16 %v72
    %v414 = vunpack.c.h.b16 %v72
    %v415 = vunpack.c.l.b16 %v73
    %v416 = vunpack.c.h.b16 %v73
    %v417 = vunpack.c.l.b16 %v74
    %v418 = vunpack.c.h.b16 %v74
    %v419 = vunpack.c.l.b16 %v75
    %v420 = vunpack.c.h.b16 %v75
    %v421 = vunpack.c.l.b16 %v76
    %v422 = vunpack.c.h.b16 %v76
    %v423 = vunpack.c.l.b16 %v77
    %v424 = vunpack.c.h.b16 %v77
    %v425 = vunpack.c.l.b16 %v78
    %v426 = vunpack.c.h.b16 %v78
    %v427 = vunpack.c.l.b16 %v79
    %v428 = vunpack.c.h.b16 %v79
    %v429 = vunpack.c.l.b16 %v80
    %v430 = vunpack.c.h.b16 %v80
    %v431 = vunpack.c.l.b16 %v81
    %v432 = vunpack.c.h.b16 %v81
    %v433 = vunpack.c.l.b16 %v82
    %v434 = vunpack.c.h.b16 %v82
    %v435 = vunpack.c.l.b16 %v83
    %v436 = vunpack.c.h.b16 %v83
    %v437 = vunpack.c.l.b16 %v84
    %v438 = vunpack.c.h.b16 %v84
    %v439 = vunpack.c.l.b16 %v85
    %v440 = vunpack.c.h.b16 %v85
    %v441 = vunpack.c.l.b16 %v86
    %v442 = vunpack.c.h.b16 %v86
    %v443 = vunpack.c.l.b16 %v87
    %v444 = vunpack.c.h.b16 %v87
    %v445 = vunpack.c.l.b16 %v88
    %v446 = vunpack.c.h.b16 %v88
    %v447 = vunpack.c.l.b16 %v89
    %v448 = vunpack.c.h.b16 %v89
    %v449 = vunpack.c.l.b16 %v90
    %v450 = vunpack.c.h.b16 %v90
    %v451 = vunpack.c.l.b16 %v91
    %v452 = vunpack.c.h.b16 %v91
    %v453 = vunpack.c.l.b16 %v92
    %v454 = vunpack.c.h.b16 %v92
    %v455 = vunpack.c.l.b16 %v93
    %v456 = vunpack.c.h.b16 %v93
    %v457 = vunpack.c.l.b16 %v94
    %v458 = vunpack.c.h.b16 %v94
    %v459 = vunpack.c.l.b16 %v95
    %v460 = vunpack.c.h.b16 %v95
    %v461 = vunpack.c.l.b16 %v96
    %v462 = vunpack.c.h.b16 %v96
    %v463 = vunpack.c.l.b16 %v97
    %v464 = vunpack.c.h.b16 %v97
    %v465 = vunpack.c.l.b16 %v98
    %v466 = vunpack.c.h.b16 %v98
    %v467 = vunpack.c.l.b16 %v99
    %v468 = vunpack.c.h.b16 %v99
    %v469 = vunpack.c.l.b16 %v100
    %v470 = vunpack.c.h.b16 %v100
    %v471 = vunpack.c.l.b16 %v101
    %v472 = vunpack.c.h.b16 %v101
    %v473 = vunpack.c.l.b16 %v102
    %v474 = vunpack.c.h.b16 %v102
    %v475 = vunpack.c.l.b16 %v103
    %v476 = vunpack.c.h.b16 %v103
    %v477 = vunpack.c.l.b16 %v104
    %v478 = vunpack.c.h.b16 %v104
    %v479 = vunpack.c.l.b16 %v105
    %v480 = vunpack.c.h.b16 %v105
    %v481 = vunpack.c.l.b16 %v106
    %v482 = vunpack.c.h.b16 %v106
    %v483 = vunpack.c.l.b16 %v107
    %v484 = vunpack.c.h.b16 %v107
    %v485 = vunpack.c.l.b16 %v108
    %v486 = vunpack.c.h.b16 %v108
    %v487 = vunpack.c.l.b16 %v109
    %v488 = vunpack.c.h.b16 %v109
    %v489 = vunpack.c.l.b16 %v110
    %v490 = vunpack.c.h.b16 %v110
    %v491 = vunpack.c.l.b16 %v111
    %v492 = vunpack.c.h.b16 %v111
    %v493 = vunpack.c.l.b16 %v112
    %v494 = vunpack.c.h.b16 %v112
    %v495 = vunpack.c.l.b16 %v113
    %v496 = vunpack.c.h.b16 %v113
    %v497 = vunpack.c.l.b16 %v114
    %v498 = vunpack.c.h.b16 %v114
    %v499 = vunpack.c.l.b16 %v115
    %v500 = vunpack.c.h.b16 %v115
    %v501 = vunpack.c.l.b16 %v116
    %v502 = vunpack.c.h.b16 %v116
    %v503 = vunpack.c.l.b16 %v117
    %v504 = vunpack.c.h.b16 %v117
    %v505 = vunpack.c.l.b16 %v118
    %v506 = vunpack.c.h.b16 %v118
    %v507 = vunpack.c.l.b16 %v119
    %v508 = vunpack.c.h.b16 %v119
    %v509 = vunpack.c.l.b16 %v120
    %v510 = vunpack.c.h.b16 %v120
    %v511 = vunpack.c.l.b16 %v121
    %v512 = vunpack.c.h.b16 %v121
    %v513 = vunpack.c.l.b16 %v122
    %v514 = vunpack.c.h.b16 %v122
    %v515 = vunpack.c.l.b16 %v123
    %v516 = vunpack.c.h.b16 %v123
    %v517 = vunpack.c.l.b16 %v124
    %v518 = vunpack.c.h.b16 %v124
    %v519 = vunpack.c.l.b16 %v125
    %v520 = vunpack.c.h.b16 %v125
    %v521 = vunpack.c.l.b16 %v126
    %v522 = vunpack.c.h.b16 %v126
    %v523 = vunpack.c.l.b16 %v127
    %v524 = vunpack.c.h.b16 %v127
    %v525 = vunpack.c.l.b16 %v128
    %v526 = vunpack.c.h.b16 %v128
    %v527 = vunpack.c.l.b16 %v129
    %v528 = vunpack.c.h.b16 %v129
    %v529 = vunpack.c.l.b16 %v130
    %v530 = vunpack.c.h.b16 %v130
    %v531 = vunpack.c.l.b16 %v131
    %v532 = vunpack.c.h.b16 %v131
    %v533 = vunpack.c.l.b16 %v132
    %v534 = vunpack.c.h.b16 %v132
    %v535 = vunpack.c.l.b16 %v133
    %v536 = vunpack.c.h.b16 %v133
    %v537 = vunpack.c.l.b16 %v134
    %v538 = vunpack.c.h.b16 %v134
    %v539 = vunpack.c.l.b16 %v135
    %v540 = vunpack.c.h.b16 %v135
    %v541 = vunpack.c.l.b16 %v136
    %v542 = vunpack.c.h.b16 %v136
    %v543 = vunpack.c.l.b16 %v137
    %v544 = vunpack.c.h.b16 %v137
    %v545 = vunpack.c.l.b16 %v138
    %v546 = vunpack.c.h.b16 %v138
    %v547 = vunpack.c.l.b16 %v139
    %v548 = vunpack.c.h.b16 %v139
    %v549 = vunpack.c.l.b16 %v140
    %v550 = vunpack.c.h.b16 %v140
    %v551 = vunpack.c.l.b16 %v141
    %v552 = vunpack.c.h.b16 %v141
    %v553 = vunpack.c.l.b16 %v142
    %v554 = vunpack.c.h.b16 %v142
    %v555 = vunpack.c.l.b16 %v143
    %v556 = vunpack.c.h.b16 %v143
    %v557 = vunpack.c.l.b16 %v144
    %v558 = vunpack.c.h.b16 %v144
    %v559 = vunpack.c.l.b16 %v145
    %v560 = vunpack.c.h.b16 %v145
    %v561 = vunpack.c.l.b16 %v146
    %v562 = vunpack.c.h.b16 %v146
    %v563 = vpack.c.b16 %v309, %v307
    %v564 = vpack.c.b16 %v310, %v308
    %v565 = vpack.c.b16 %v313, %v311
    %v566 = vpack.c.b16 %v314, %v312
    %v567 = vpack.c.b16 %v317, %v315
    %v568 = vpack.c.b16 %v318, %v316
    %v569 = vpack.c.b16 %v321, %v319
    %v570 = vpack.c.b16 %v322, %v320
    %v571 = vpack.c.b16 %v325, %v323
    %v572 = vpack.c.b16 %v326, %v324
    %v573 = vpack.c.b16 %v329, %v327
    %v574 = vpack.c.b16 %v330, %v328
    %v575 = vpack.c.b16 %v333, %v331
    %v576 = vpack.c.b16 %v334, %v332
    %v577 = vpack.c.b16 %v337, %v335
    %v578 = vpack.c.b16 %v338, %v336
    %v579 = vpack.c.b16 %v341, %v339
    %v580 = vpack.c.b16 %v342, %v340
    %v581 = vpack.c.b16 %v345, %v343
    %v582 = vpack.c.b16 %v346, %v344
    %v583 = vpack.c.b16 %v349, %v347
    %v584 = vpack.c.b16 %v350, %v348
    %v585 = vpack.c.b16 %v353, %v351
    %v586 = vpack.c.b16 %v354, %v352
    %v587 = vpack.c.b16 %v357, %v355
    %v588 = vpack.c.b16 %v358, %v356
    %v589 = vpack.c.b16 %v361, %v359
    %v590 = vpack.c.b16 %v362, %v360
    %v591 = vpack.c.b16 %v365, %v363
    %v592 = vpack.c.b16 %v366, %v364
    %v593 = vpack.c.b16 %v369, %v367
    %v594 = vpack.c.b16 %v370, %v368
    %v595 = vpack.c.b16 %v373, %v371
    %v596 = vpack.c.b16 %v374, %v372
    %v597 = vpack.c.b16 %v377, %v375
    %v598 = vpack.c.b16 %v378, %v376
    %v599 = vpack.c.b16 %v381, %v379
    %v600 = vpack.c.b16 %v382, %v380
    %v601 = vpack.c.b16 %v385, %v383
    %v602 = vpack.c.b16 %v386, %v384
    %v603 = vpack.c.b16 %v389, %v387
    %v604 = vpack.c.b16 %v390, %v388
    %v605 = vpack.c.b16 %v393, %v391
    %v606 = vpack.c.b16 %v394, %v392
    %v607 = vpack.c.b16 %v397, %v395
    %v608 = vpack.c.b16 %v398, %v396
    %v609 = vpack.c.b16 %v401, %v399
    %v610 = vpack.c.b16 %v402, %v400
    %v611 = vpack.c.b16 %v405, %v403
    %v612 = vpack.c.b16 %v406, %v404
    %v613 = vpack.c.b16 %v409, %v407
    %v614 = vpack.c.b16 %v410, %v408
    %v615 = vpack.c.b16 %v413, %v411
    %v616 = vpack.c.b16 %v414, %v412
    %v617 = vpack.c.b16 %v417, %v415
    %v618 = vpack.c.b16 %v418, %v416
    %v619 = vpack.c.b16 %v421, %v419
    %v620 = vpack.c.b16 %v422, %v420
    %v621 = vpack.c.b16 %v425, %v423
    %v622 = vpack.c.b16 %v426, %v424
    %v623 = vpack.c.b16 %v429, %v427
    %v624 = vpack.c.b16 %v430, %v428
    %v625 = vpack.c.b16 %v433, %v431
    %v626 = vpack.c.b16 %v434, %v432
    %v627 = vpack.c.b16 %v437, %v435
    %v628 = vpack.c.b16 %v438, %v436
    %v629 = vpack.c.b16 %v441, %v439
    %v630 = vpack.c.b16 %v442, %v440
    %v631 = vpack.c.b16 %v445, %v443
    %v632 = vpack.c.b16 %v446, %v444
    %v633 = vpack.c.b16 %v449, %v447
    %v634 = vpack.c.b16 %v450, %v448
    %v635 = vpack.c.b16 %v453, %v451
    %v636 = vpack.c.b16 %v454, %v452
    %v637 = vpack.c.b16 %v457, %v455
    %v638 = vpack.c.b16 %v458, %v456
    %v639 = vpack.c.b16 %v461, %v459
    %v640 = vpack.c.b16 %v462, %v460
    %v641 = vpack.c.b16 %v465, %v463
    %v642 = vpack.c.b16 %v466, %v464
    %v643 = vpack.c.b16 %v469, %v467
    %v644 = vpack.c.b16 %v470, %v468
    %v645 = vpack.c.b16 %v473, %v471
    %v646 = vpack.c.b16 %v474, %v472
    %v647 = vpack.c.b16 %v477, %v475
    %v648 = vpack.c.b16 %v478, %v476
    %v649 = vpack.c.b16 %v481, %v479
    %v650 = vpack.c.b16 %v482, %v480
    %v651 = vpack.c.b16 %v485, %v483
    %v652 = vpack.c.b16 %v486, %v484
    %v653 = vpack.c.b16 %v489, %v487
    %v654 = vpack.c.b16 %v490, %v488
    %v655 = vpack.c.b16 %v493, %v491
    %v656 = vpack.c.b16 %v494, %v492
    %v657 = vpack.c.b16 %v497, %v495
    %v658 = vpack.c.b16 %v498, %v496
    %v659 = vpack.c.b16 %v501, %v499
    %v660 = vpack.c.b16 %v502, %v500
    %v661 = vpack.c.b16 %v505, %v503
    %v662 = vpack.c.b16 %v506, %v504
    %v663 = vpack.c.b16 %v509, %v507
    %v664 = vpack.c.b16 %v510, %v508
    %v665 = vpack.c.b16 %v513, %v511
    %v666 = vpack.c.b16 %v514, %v512
    %v667 = vpack.c.b16 %v517, %v515
    %v668 = vpack.c.b16 %v518, %v516
    %v669 = vpack.c.b16 %v521, %v519
    %v670 = vpack.c.b16 %v522, %v520
    %v671 = vpack.c.b16 %v525, %v523
    %v672 = vpack.c.b16 %v526, %v524
    %v673 = vpack.c.b16 %v529, %v527
    %v674 = vpack.c.b16 %v530, %v528
    %v675 = vpack.c.b16 %v533, %v531
    %v676 = vpack.c.b16 %v534, %v532
    %v677 = vpack.c.b16 %v537, %v535
    %v678 = vpack.c.b16 %v538, %v536
    %v679 = vpack.c.b16 %v541, %v539
    %v680 = vpack.c.b16 %v542, %v540
    %v681 = vpack.c.b16 %v545, %v543
    %v682 = vpack.c.b16 %v546, %v544
    %v683 = vpack.c.b16 %v549, %v547
    %v684 = vpack.c.b16 %v550, %v548
    %v685 = vpack.c.b16 %v553, %v551
    %v686 = vpack.c.b16 %v554, %v552
    %v687 = vpack.c.b16 %v557, %v555
    %v688 = vpack.c.b16 %v558, %v556
    %v689 = vpack.c.b16 %v561, %v559
    %v690 = vpack.c.b16 %v562, %v560
    %v851 = vunpack.c.l.b16 %v147
    %v852 = vunpack.c.l.b16 %v148
    %v853 = vunpack.c.l.b16 %v149
    %v854 = vunpack.c.l.b16 %v150
    %v855 = vunpack.c.l.b16 %v151
    %v856 = vunpack.c.l.b16 %v152
    %v857 = vunpack.c.l.b16 %v153
    %v858 = vunpack.c.l.b16 %v154
    %v859 = vunpack.c.l.b16 %v155
    %v860 = vunpack.c.l.b16 %v156
    %v861 = vunpack.c.l.b16 %v157
    %v862 = vunpack.c.l.b16 %v158
    %v863 = vunpack.c.l.b16 %v159
    %v864 = vunpack.c.l.b16 %v160
    %v865 = vunpack.c.l.b16 %v161
    %v866 = vunpack.c.l.b16 %v162
    %v867 = vunpack.c.l.b16 %v163
    %v868 = vunpack.c.l.b16 %v164
    %v869 = vunpack.c.l.b16 %v165
    %v870 = vunpack.c.l.b16 %v166
    %v871 = vunpack.c.l.b16 %v167
    %v872 = vunpack.c.l.b16 %v168
    %v873 = vunpack.c.l.b16 %v169
    %v874 = vunpack.c.l.b16 %v170
    %v875 = vunpack.c.l.b16 %v171
    %v876 = vunpack.c.l.b16 %v172
    %v877 = vunpack.c.l.b16 %v173
    %v878 = vunpack.c.l.b16 %v174
    %v879 = vunpack.c.l.b16 %v175
    %v880 = vunpack.c.l.b16 %v176
    %v881 = vunpack.c.l.b16 %v177
    %v882 = vunpack.c.l.b16 %v178
    %v883 = vpack.c.b16 %v852, %v851
    %v884 = vpack.c.b16 %v854, %v853
    %v885 = vpack.c.b16 %v856, %v855
    %v886 = vpack.c.b16 %v858, %v857
    %v887 = vpack.c.b16 %v860, %v859
    %v888 = vpack.c.b16 %v862, %v861
    %v889 = vpack.c.b16 %v864, %v863
    %v890 = vpack.c.b16 %v866, %v865
    %v891 = vpack.c.b16 %v868, %v867
    %v892 = vpack.c.b16 %v870, %v869
    %v893 = vpack.c.b16 %v872, %v871
    %v894 = vpack.c.b16 %v874, %v873
    %v895 = vpack.c.b16 %v876, %v875
    %v896 = vpack.c.b16 %v878, %v877
    %v897 = vpack.c.b16 %v880, %v879
    %v898 = vpack.c.b16 %v882, %v881
    %915 = vmatprep.subr.bf16.mxu0 0
    %916 = vmatpush1.bf16.msra.mxu0 %v890
    %917 = vmatprep.subr.bf16.mxu0 0
    %918 = vmatpush1.bf16.msra.mxu0 %v889
    %919 = vmatprep.subr.bf16.mxu0 0
    %920 = vmatpush1.bf16.msra.mxu0 %v888
    %921 = vmatprep.subr.bf16.mxu0 0
    %922 = vmatpush1.bf16.msra.mxu0 %v887
    %923 = vmatprep.subr.bf16.mxu0 0
    %924 = vmatpush1.bf16.msra.mxu0 %v886
    %925 = vmatprep.subr.bf16.mxu0 0
    %926 = vmatpush1.bf16.msra.mxu0 %v885
    %927 = vmatprep.subr.bf16.mxu0 0
    %928 = vmatpush1.bf16.msra.mxu0 %v884
    %929 = vmatprep.subr.bf16.mxu0 0
    %930 = vmatpush1.bf16.msra.mxu0 %v883
    %931 = vmatprep.subr.bf16.mxu0 0
    %932 = vmatpush2.bf16.msra.mxu0 %v898
    %933 = vmatprep.subr.bf16.mxu0 0
    %934 = vmatpush2.bf16.msra.mxu0 %v897
    %935 = vmatprep.subr.bf16.mxu0 0
    %936 = vmatpush2.bf16.msra.mxu0 %v896
    %937 = vmatprep.subr.bf16.mxu0 0
    %938 = vmatpush2.bf16.msra.mxu0 %v895
    %939 = vmatprep.subr.bf16.mxu0 0
    %940 = vmatpush2.bf16.msra.mxu0 %v894
    %941 = vmatprep.subr.bf16.mxu0 0
    %942 = vmatpush2.bf16.msra.mxu0 %v893
    %943 = vmatprep.subr.bf16.mxu0 0
    %944 = vmatpush2.bf16.msra.mxu0 %v892
    %945 = vmatprep.subr.bf16.mxu0 0
    %946 = vmatpush2.bf16.msra.mxu0 %v891
    %947 = vmatprep.mubr.bf16.mxu0 %v564
    %948 = vmatmul.mubr.bf16.gmra.mxu0 %v563
    %v949 = vpop.f32.mrf.mxu0
    %v950 = vadd.f32 0.0, %v949
    %v951 = vpop.f32.mrf.mxu0
    %v952 = vpop.f32.mrf.mxu0
    %v953 = vadd.f32 0.0, %v952
    %v954 = vpop.f32.mrf.mxu0
    %955 = vmatprep.mubr.bf16.mxu0 %v566
    %956 = vmatmul.mubr.bf16.gmra.mxu0 %v565
    %v957 = vpop.f32.mrf.mxu0
    %v958 = vadd.f32 0.0, %v957
    %v959 = vpop.f32.mrf.mxu0
    %v960 = vpop.f32.mrf.mxu0
    %v961 = vadd.f32 0.0, %v960
    %v962 = vpop.f32.mrf.mxu0
    %963 = vmatprep.mubr.bf16.mxu0 %v568
    %964 = vmatmul.mubr.bf16.gmra.mxu0 %v567
    %v965 = vpop.f32.mrf.mxu0
    %v966 = vadd.f32 0.0, %v965
    %v967 = vpop.f32.mrf.mxu0
    %v968 = vpop.f32.mrf.mxu0
    %v969 = vadd.f32 0.0, %v968
    %v970 = vpop.f32.mrf.mxu0
    %971 = vmatprep.mubr.bf16.mxu0 %v570
    %972 = vmatmul.mubr.bf16.gmra.mxu0 %v569
    %v973 = vpop.f32.mrf.mxu0
    %v974 = vadd.f32 0.0, %v973
    %v975 = vpop.f32.mrf.mxu0
    %v976 = vpop.f32.mrf.mxu0
    %v977 = vadd.f32 0.0, %v976
    %v978 = vpop.f32.mrf.mxu0
    %979 = vmatprep.mubr.bf16.mxu0 %v572
    %980 = vmatmul.mubr.bf16.gmra.mxu0 %v571
    %v981 = vpop.f32.mrf.mxu0
    %v982 = vadd.f32 0.0, %v981
    %v983 = vpop.f32.mrf.mxu0
    %v984 = vpop.f32.mrf.mxu0
    %v985 = vadd.f32 0.0, %v984
    %v986 = vpop.f32.mrf.mxu0
    %987 = vmatprep.mubr.bf16.mxu0 %v574
    %988 = vmatmul.mubr.bf16.gmra.mxu0 %v573
    %v989 = vpop.f32.mrf.mxu0
    %v990 = vadd.f32 0.0, %v989
    %v991 = vpop.f32.mrf.mxu0
    %v992 = vpop.f32.mrf.mxu0
    %v993 = vadd.f32 0.0, %v992
    %v994 = vpop.f32.mrf.mxu0
    %995 = vmatprep.mubr.bf16.mxu0 %v576
    %996 = vmatmul.mubr.bf16.gmra.mxu0 %v575
    %v997 = vpop.f32.mrf.mxu0
    %v998 = vadd.f32 0.0, %v997
    %v999 = vpop.f32.mrf.mxu0
    %v1000 = vpop.f32.mrf.mxu0
    %v1001 = vadd.f32 0.0, %v1000
    %v1002 = vpop.f32.mrf.mxu0
    %1003 = vmatprep.mubr.bf16.mxu0 %v578
    %1004 = vmatmul.mubr.bf16.gmra.mxu0 %v577
    %v1005 = vpop.f32.mrf.mxu0
    %v1006 = vadd.f32 0.0, %v1005
    %v1007 = vpop.f32.mrf.mxu0
    %v1008 = vpop.f32.mrf.mxu0
    %v1009 = vadd.f32 0.0, %v1008
    %v1010 = vpop.f32.mrf.mxu0
    %1011 = vmatprep.mubr.bf16.mxu0 %v580
    %1012 = vmatmul.mubr.bf16.gmra.mxu0 %v579
    %v1013 = vpop.f32.mrf.mxu0
    %v1014 = vadd.f32 0.0, %v1013
    %v1015 = vpop.f32.mrf.mxu0
    %v1016 = vpop.f32.mrf.mxu0
    %v1017 = vadd.f32 0.0, %v1016
    %v1018 = vpop.f32.mrf.mxu0
    %1019 = vmatprep.mubr.bf16.mxu0 %v582
    %1020 = vmatmul.mubr.bf16.gmra.mxu0 %v581
    %v1021 = vpop.f32.mrf.mxu0
    %v1022 = vadd.f32 0.0, %v1021
    %v1023 = vpop.f32.mrf.mxu0
    %v1024 = vpop.f32.mrf.mxu0
    %v1025 = vadd.f32 0.0, %v1024
    %v1026 = vpop.f32.mrf.mxu0
    %1027 = vmatprep.mubr.bf16.mxu0 %v584
    %1028 = vmatmul.mubr.bf16.gmra.mxu0 %v583
    %v1029 = vpop.f32.mrf.mxu0
    %v1030 = vadd.f32 0.0, %v1029
    %v1031 = vpop.f32.mrf.mxu0
    %v1032 = vpop.f32.mrf.mxu0
    %v1033 = vadd.f32 0.0, %v1032
    %v1034 = vpop.f32.mrf.mxu0
    %1035 = vmatprep.mubr.bf16.mxu0 %v586
    %1036 = vmatmul.mubr.bf16.gmra.mxu0 %v585
    %v1037 = vpop.f32.mrf.mxu0
    %v1038 = vadd.f32 0.0, %v1037
    %v1039 = vpop.f32.mrf.mxu0
    %v1040 = vpop.f32.mrf.mxu0
    %v1041 = vadd.f32 0.0, %v1040
    %v1042 = vpop.f32.mrf.mxu0
    %1043 = vmatprep.mubr.bf16.mxu0 %v588
    %1044 = vmatmul.mubr.bf16.gmra.mxu0 %v587
    %v1045 = vpop.f32.mrf.mxu0
    %v1046 = vadd.f32 0.0, %v1045
    %v1047 = vpop.f32.mrf.mxu0
    %v1048 = vpop.f32.mrf.mxu0
    %v1049 = vadd.f32 0.0, %v1048
    %v1050 = vpop.f32.mrf.mxu0
    %1051 = vmatprep.mubr.bf16.mxu0 %v590
    %1052 = vmatmul.mubr.bf16.gmra.mxu0 %v589
    %v1053 = vpop.f32.mrf.mxu0
    %v1054 = vadd.f32 0.0, %v1053
    %v1055 = vpop.f32.mrf.mxu0
    %v1056 = vpop.f32.mrf.mxu0
    %v1057 = vadd.f32 0.0, %v1056
    %v1058 = vpop.f32.mrf.mxu0
    %1059 = vmatprep.mubr.bf16.mxu0 %v592
    %1060 = vmatmul.mubr.bf16.gmra.mxu0 %v591
    %v1061 = vpop.f32.mrf.mxu0
    %v1062 = vadd.f32 0.0, %v1061
    %v1063 = vpop.f32.mrf.mxu0
    %v1064 = vpop.f32.mrf.mxu0
    %v1065 = vadd.f32 0.0, %v1064
    %v1066 = vpop.f32.mrf.mxu0
    %1067 = vmatprep.mubr.bf16.mxu0 %v594
    %1068 = vmatmul.mubr.bf16.gmra.mxu0 %v593
    %v1069 = vpop.f32.mrf.mxu0
    %v1070 = vadd.f32 0.0, %v1069
    %v1071 = vpop.f32.mrf.mxu0
    %v1072 = vpop.f32.mrf.mxu0
    %v1073 = vadd.f32 0.0, %v1072
    %v1074 = vpop.f32.mrf.mxu0
    %1075 = vmatprep.mubr.bf16.mxu0 %v596
    %1076 = vmatmul.mubr.bf16.gmra.mxu0 %v595
    %v1077 = vpop.f32.mrf.mxu0
    %v1078 = vadd.f32 0.0, %v1077
    %v1079 = vpop.f32.mrf.mxu0
    %v1080 = vpop.f32.mrf.mxu0
    %v1081 = vadd.f32 0.0, %v1080
    %v1082 = vpop.f32.mrf.mxu0
    %1083 = vmatprep.mubr.bf16.mxu0 %v598
    %1084 = vmatmul.mubr.bf16.gmra.mxu0 %v597
    %v1085 = vpop.f32.mrf.mxu0
    %v1086 = vadd.f32 0.0, %v1085
    %v1087 = vpop.f32.mrf.mxu0
    %v1088 = vpop.f32.mrf.mxu0
    %v1089 = vadd.f32 0.0, %v1088
    %v1090 = vpop.f32.mrf.mxu0
    %1091 = vmatprep.mubr.bf16.mxu0 %v600
    %1092 = vmatmul.mubr.bf16.gmra.mxu0 %v599
    %v1093 = vpop.f32.mrf.mxu0
    %v1094 = vadd.f32 0.0, %v1093
    %v1095 = vpop.f32.mrf.mxu0
    %v1096 = vpop.f32.mrf.mxu0
    %v1097 = vadd.f32 0.0, %v1096
    %v1098 = vpop.f32.mrf.mxu0
    %1099 = vmatprep.mubr.bf16.mxu0 %v602
    %1100 = vmatmul.mubr.bf16.gmra.mxu0 %v601
    %v1101 = vpop.f32.mrf.mxu0
    %v1102 = vadd.f32 0.0, %v1101
    %v1103 = vpop.f32.mrf.mxu0
    %v1104 = vpop.f32.mrf.mxu0
    %v1105 = vadd.f32 0.0, %v1104
    %v1106 = vpop.f32.mrf.mxu0
    %1107 = vmatprep.mubr.bf16.mxu0 %v604
    %1108 = vmatmul.mubr.bf16.gmra.mxu0 %v603
    %v1109 = vpop.f32.mrf.mxu0
    %v1110 = vadd.f32 0.0, %v1109
    %v1111 = vpop.f32.mrf.mxu0
    %v1112 = vpop.f32.mrf.mxu0
    %v1113 = vadd.f32 0.0, %v1112
    %v1114 = vpop.f32.mrf.mxu0
    %1115 = vmatprep.mubr.bf16.mxu0 %v606
    %1116 = vmatmul.mubr.bf16.gmra.mxu0 %v605
    %v1117 = vpop.f32.mrf.mxu0
    %v1118 = vadd.f32 0.0, %v1117
    %v1119 = vpop.f32.mrf.mxu0
    %v1120 = vpop.f32.mrf.mxu0
    %v1121 = vadd.f32 0.0, %v1120
    %v1122 = vpop.f32.mrf.mxu0
    %1123 = vmatprep.mubr.bf16.mxu0 %v608
    %1124 = vmatmul.mubr.bf16.gmra.mxu0 %v607
    %v1125 = vpop.f32.mrf.mxu0
    %v1126 = vadd.f32 0.0, %v1125
    %v1127 = vpop.f32.mrf.mxu0
    %v1128 = vpop.f32.mrf.mxu0
    %v1129 = vadd.f32 0.0, %v1128
    %v1130 = vpop.f32.mrf.mxu0
    %1131 = vmatprep.mubr.bf16.mxu0 %v610
    %1132 = vmatmul.mubr.bf16.gmra.mxu0 %v609
    %v1133 = vpop.f32.mrf.mxu0
    %v1134 = vadd.f32 0.0, %v1133
    %v1135 = vpop.f32.mrf.mxu0
    %v1136 = vpop.f32.mrf.mxu0
    %v1137 = vadd.f32 0.0, %v1136
    %v1138 = vpop.f32.mrf.mxu0
    %1139 = vmatprep.mubr.bf16.mxu0 %v612
    %1140 = vmatmul.mubr.bf16.gmra.mxu0 %v611
    %v1141 = vpop.f32.mrf.mxu0
    %v1142 = vadd.f32 0.0, %v1141
    %v1143 = vpop.f32.mrf.mxu0
    %v1144 = vpop.f32.mrf.mxu0
    %v1145 = vadd.f32 0.0, %v1144
    %v1146 = vpop.f32.mrf.mxu0
    %1147 = vmatprep.mubr.bf16.mxu0 %v614
    %1148 = vmatmul.mubr.bf16.gmra.mxu0 %v613
    %v1149 = vpop.f32.mrf.mxu0
    %v1150 = vadd.f32 0.0, %v1149
    %v1151 = vpop.f32.mrf.mxu0
    %v1152 = vpop.f32.mrf.mxu0
    %v1153 = vadd.f32 0.0, %v1152
    %v1154 = vpop.f32.mrf.mxu0
    %1155 = vmatprep.mubr.bf16.mxu0 %v616
    %1156 = vmatmul.mubr.bf16.gmra.mxu0 %v615
    %v1157 = vpop.f32.mrf.mxu0
    %v1158 = vadd.f32 0.0, %v1157
    %v1159 = vpop.f32.mrf.mxu0
    %v1160 = vpop.f32.mrf.mxu0
    %v1161 = vadd.f32 0.0, %v1160
    %v1162 = vpop.f32.mrf.mxu0
    %1163 = vmatprep.mubr.bf16.mxu0 %v618
    %1164 = vmatmul.mubr.bf16.gmra.mxu0 %v617
    %v1165 = vpop.f32.mrf.mxu0
    %v1166 = vadd.f32 0.0, %v1165
    %v1167 = vpop.f32.mrf.mxu0
    %v1168 = vpop.f32.mrf.mxu0
    %v1169 = vadd.f32 0.0, %v1168
    %v1170 = vpop.f32.mrf.mxu0
    %1171 = vmatprep.mubr.bf16.mxu0 %v620
    %1172 = vmatmul.mubr.bf16.gmra.mxu0 %v619
    %v1173 = vpop.f32.mrf.mxu0
    %v1174 = vadd.f32 0.0, %v1173
    %v1175 = vpop.f32.mrf.mxu0
    %v1176 = vpop.f32.mrf.mxu0
    %v1177 = vadd.f32 0.0, %v1176
    %v1178 = vpop.f32.mrf.mxu0
    %1179 = vmatprep.mubr.bf16.mxu0 %v622
    %1180 = vmatmul.mubr.bf16.gmra.mxu0 %v621
    %v1181 = vpop.f32.mrf.mxu0
    %v1182 = vadd.f32 0.0, %v1181
    %v1183 = vpop.f32.mrf.mxu0
    %v1184 = vpop.f32.mrf.mxu0
    %v1185 = vadd.f32 0.0, %v1184
    %v1186 = vpop.f32.mrf.mxu0
    %1187 = vmatprep.mubr.bf16.mxu0 %v624
    %1188 = vmatmul.mubr.bf16.gmra.mxu0 %v623
    %v1189 = vpop.f32.mrf.mxu0
    %v1190 = vadd.f32 0.0, %v1189
    %v1191 = vpop.f32.mrf.mxu0
    %v1192 = vpop.f32.mrf.mxu0
    %v1193 = vadd.f32 0.0, %v1192
    %v1194 = vpop.f32.mrf.mxu0
    %1195 = vmatprep.mubr.bf16.mxu0 %v626
    %1196 = vmatmul.mubr.bf16.gmra.mxu0 %v625
    %v1197 = vpop.f32.mrf.mxu0
    %v1198 = vadd.f32 0.0, %v1197
    %v1199 = vpop.f32.mrf.mxu0
    %v1200 = vpop.f32.mrf.mxu0
    %v1201 = vadd.f32 0.0, %v1200
    %v1202 = vpop.f32.mrf.mxu0
    %1203 = vmatprep.mubr.bf16.mxu0 %v628
    %1204 = vmatmul.mubr.bf16.gmra.mxu0 %v627
    %v1205 = vpop.f32.mrf.mxu0
    %v1206 = vadd.f32 0.0, %v1205
    %v1207 = vpop.f32.mrf.mxu0
    %v1208 = vpop.f32.mrf.mxu0
    %v1209 = vadd.f32 0.0, %v1208
    %v1210 = vpop.f32.mrf.mxu0
    %1211 = vmatprep.mubr.bf16.mxu0 %v630
    %1212 = vmatmul.mubr.bf16.gmra.mxu0 %v629
    %v1213 = vpop.f32.mrf.mxu0
    %v1214 = vadd.f32 0.0, %v1213
    %v1215 = vpop.f32.mrf.mxu0
    %v1216 = vpop.f32.mrf.mxu0
    %v1217 = vadd.f32 0.0, %v1216
    %v1218 = vpop.f32.mrf.mxu0
    %1219 = vmatprep.mubr.bf16.mxu0 %v632
    %1220 = vmatmul.mubr.bf16.gmra.mxu0 %v631
    %v1221 = vpop.f32.mrf.mxu0
    %v1222 = vadd.f32 0.0, %v1221
    %v1223 = vpop.f32.mrf.mxu0
    %v1224 = vpop.f32.mrf.mxu0
    %v1225 = vadd.f32 0.0, %v1224
    %v1226 = vpop.f32.mrf.mxu0
    %1227 = vmatprep.mubr.bf16.mxu0 %v634
    %1228 = vmatmul.mubr.bf16.gmra.mxu0 %v633
    %v1229 = vpop.f32.mrf.mxu0
    %v1230 = vadd.f32 0.0, %v1229
    %v1231 = vpop.f32.mrf.mxu0
    %v1232 = vpop.f32.mrf.mxu0
    %v1233 = vadd.f32 0.0, %v1232
    %v1234 = vpop.f32.mrf.mxu0
    %1235 = vmatprep.mubr.bf16.mxu0 %v636
    %1236 = vmatmul.mubr.bf16.gmra.mxu0 %v635
    %v1237 = vpop.f32.mrf.mxu0
    %v1238 = vadd.f32 0.0, %v1237
    %v1239 = vpop.f32.mrf.mxu0
    %v1240 = vpop.f32.mrf.mxu0
    %v1241 = vadd.f32 0.0, %v1240
    %v1242 = vpop.f32.mrf.mxu0
    %1243 = vmatprep.mubr.bf16.mxu0 %v638
    %1244 = vmatmul.mubr.bf16.gmra.mxu0 %v637
    %v1245 = vpop.f32.mrf.mxu0
    %v1246 = vadd.f32 0.0, %v1245
    %v1247 = vpop.f32.mrf.mxu0
    %v1248 = vpop.f32.mrf.mxu0
    %v1249 = vadd.f32 0.0, %v1248
    %v1250 = vpop.f32.mrf.mxu0
    %1251 = vmatprep.mubr.bf16.mxu0 %v640
    %1252 = vmatmul.mubr.bf16.gmra.mxu0 %v639
    %v1253 = vpop.f32.mrf.mxu0
    %v1254 = vadd.f32 0.0, %v1253
    %v1255 = vpop.f32.mrf.mxu0
    %v1256 = vpop.f32.mrf.mxu0
    %v1257 = vadd.f32 0.0, %v1256
    %v1258 = vpop.f32.mrf.mxu0
    %1259 = vmatprep.mubr.bf16.mxu0 %v642
    %1260 = vmatmul.mubr.bf16.gmra.mxu0 %v641
    %v1261 = vpop.f32.mrf.mxu0
    %v1262 = vadd.f32 0.0, %v1261
    %v1263 = vpop.f32.mrf.mxu0
    %v1264 = vpop.f32.mrf.mxu0
    %v1265 = vadd.f32 0.0, %v1264
    %v1266 = vpop.f32.mrf.mxu0
    %1267 = vmatprep.mubr.bf16.mxu0 %v644
    %1268 = vmatmul.mubr.bf16.gmra.mxu0 %v643
    %v1269 = vpop.f32.mrf.mxu0
    %v1270 = vadd.f32 0.0, %v1269
    %v1271 = vpop.f32.mrf.mxu0
    %v1272 = vpop.f32.mrf.mxu0
    %v1273 = vadd.f32 0.0, %v1272
    %v1274 = vpop.f32.mrf.mxu0
    %1275 = vmatprep.mubr.bf16.mxu0 %v646
    %1276 = vmatmul.mubr.bf16.gmra.mxu0 %v645
    %v1277 = vpop.f32.mrf.mxu0
    %v1278 = vadd.f32 0.0, %v1277
    %v1279 = vpop.f32.mrf.mxu0
    %v1280 = vpop.f32.mrf.mxu0
    %v1281 = vadd.f32 0.0, %v1280
    %v1282 = vpop.f32.mrf.mxu0
    %1283 = vmatprep.mubr.bf16.mxu0 %v648
    %1284 = vmatmul.mubr.bf16.gmra.mxu0 %v647
    %v1285 = vpop.f32.mrf.mxu0
    %v1286 = vadd.f32 0.0, %v1285
    %v1287 = vpop.f32.mrf.mxu0
    %v1288 = vpop.f32.mrf.mxu0
    %v1289 = vadd.f32 0.0, %v1288
    %v1290 = vpop.f32.mrf.mxu0
    %1291 = vmatprep.mubr.bf16.mxu0 %v650
    %1292 = vmatmul.mubr.bf16.gmra.mxu0 %v649
    %v1293 = vpop.f32.mrf.mxu0
    %v1294 = vadd.f32 0.0, %v1293
    %v1295 = vpop.f32.mrf.mxu0
    %v1296 = vpop.f32.mrf.mxu0
    %v1297 = vadd.f32 0.0, %v1296
    %v1298 = vpop.f32.mrf.mxu0
    %1299 = vmatprep.mubr.bf16.mxu0 %v652
    %1300 = vmatmul.mubr.bf16.gmra.mxu0 %v651
    %v1301 = vpop.f32.mrf.mxu0
    %v1302 = vadd.f32 0.0, %v1301
    %v1303 = vpop.f32.mrf.mxu0
    %v1304 = vpop.f32.mrf.mxu0
    %v1305 = vadd.f32 0.0, %v1304
    %v1306 = vpop.f32.mrf.mxu0
    %1307 = vmatprep.mubr.bf16.mxu0 %v654
    %1308 = vmatmul.mubr.bf16.gmra.mxu0 %v653
    %v1309 = vpop.f32.mrf.mxu0
    %v1310 = vadd.f32 0.0, %v1309
    %v1311 = vpop.f32.mrf.mxu0
    %v1312 = vpop.f32.mrf.mxu0
    %v1313 = vadd.f32 0.0, %v1312
    %v1314 = vpop.f32.mrf.mxu0
    %1315 = vmatprep.mubr.bf16.mxu0 %v656
    %1316 = vmatmul.mubr.bf16.gmra.mxu0 %v655
    %v1317 = vpop.f32.mrf.mxu0
    %v1318 = vadd.f32 0.0, %v1317
    %v1319 = vpop.f32.mrf.mxu0
    %v1320 = vpop.f32.mrf.mxu0
    %v1321 = vadd.f32 0.0, %v1320
    %v1322 = vpop.f32.mrf.mxu0
    %1323 = vmatprep.mubr.bf16.mxu0 %v658
    %1324 = vmatmul.mubr.bf16.gmra.mxu0 %v657
    %v1325 = vpop.f32.mrf.mxu0
    %v1326 = vadd.f32 0.0, %v1325
    %v1327 = vpop.f32.mrf.mxu0
    %v1328 = vpop.f32.mrf.mxu0
    %v1329 = vadd.f32 0.0, %v1328
    %v1330 = vpop.f32.mrf.mxu0
    %1331 = vmatprep.mubr.bf16.mxu0 %v660
    %1332 = vmatmul.mubr.bf16.gmra.mxu0 %v659
    %v1333 = vpop.f32.mrf.mxu0
    %v1334 = vadd.f32 0.0, %v1333
    %v1335 = vpop.f32.mrf.mxu0
    %v1336 = vpop.f32.mrf.mxu0
    %v1337 = vadd.f32 0.0, %v1336
    %v1338 = vpop.f32.mrf.mxu0
    %1339 = vmatprep.mubr.bf16.mxu0 %v662
    %1340 = vmatmul.mubr.bf16.gmra.mxu0 %v661
    %v1341 = vpop.f32.mrf.mxu0
    %v1342 = vadd.f32 0.0, %v1341
    %v1343 = vpop.f32.mrf.mxu0
    %v1344 = vpop.f32.mrf.mxu0
    %v1345 = vadd.f32 0.0, %v1344
    %v1346 = vpop.f32.mrf.mxu0
    %1347 = vmatprep.mubr.bf16.mxu0 %v664
    %1348 = vmatmul.mubr.bf16.gmra.mxu0 %v663
    %v1349 = vpop.f32.mrf.mxu0
    %v1350 = vadd.f32 0.0, %v1349
    %v1351 = vpop.f32.mrf.mxu0
    %v1352 = vpop.f32.mrf.mxu0
    %v1353 = vadd.f32 0.0, %v1352
    %v1354 = vpop.f32.mrf.mxu0
    %1355 = vmatprep.mubr.bf16.mxu0 %v666
    %1356 = vmatmul.mubr.bf16.gmra.mxu0 %v665
    %v1357 = vpop.f32.mrf.mxu0
    %v1358 = vadd.f32 0.0, %v1357
    %v1359 = vpop.f32.mrf.mxu0
    %v1360 = vpop.f32.mrf.mxu0
    %v1361 = vadd.f32 0.0, %v1360
    %v1362 = vpop.f32.mrf.mxu0
    %1363 = vmatprep.mubr.bf16.mxu0 %v668
    %1364 = vmatmul.mubr.bf16.gmra.mxu0 %v667
    %v1365 = vpop.f32.mrf.mxu0
    %v1366 = vadd.f32 0.0, %v1365
    %v1367 = vpop.f32.mrf.mxu0
    %v1368 = vpop.f32.mrf.mxu0
    %v1369 = vadd.f32 0.0, %v1368
    %v1370 = vpop.f32.mrf.mxu0
    %1371 = vmatprep.mubr.bf16.mxu0 %v670
    %1372 = vmatmul.mubr.bf16.gmra.mxu0 %v669
    %v1373 = vpop.f32.mrf.mxu0
    %v1374 = vadd.f32 0.0, %v1373
    %v1375 = vpop.f32.mrf.mxu0
    %v1376 = vpop.f32.mrf.mxu0
    %v1377 = vadd.f32 0.0, %v1376
    %v1378 = vpop.f32.mrf.mxu0
    %1379 = vmatprep.mubr.bf16.mxu0 %v672
    %1380 = vmatmul.mubr.bf16.gmra.mxu0 %v671
    %v1381 = vpop.f32.mrf.mxu0
    %v1382 = vadd.f32 0.0, %v1381
    %v1383 = vpop.f32.mrf.mxu0
    %v1384 = vpop.f32.mrf.mxu0
    %v1385 = vadd.f32 0.0, %v1384
    %v1386 = vpop.f32.mrf.mxu0
    %1387 = vmatprep.mubr.bf16.mxu0 %v674
    %1388 = vmatmul.mubr.bf16.gmra.mxu0 %v673
    %v1389 = vpop.f32.mrf.mxu0
    %v1390 = vadd.f32 0.0, %v1389
    %v1391 = vpop.f32.mrf.mxu0
    %v1392 = vpop.f32.mrf.mxu0
    %v1393 = vadd.f32 0.0, %v1392
    %v1394 = vpop.f32.mrf.mxu0
    %1395 = vmatprep.mubr.bf16.mxu0 %v676
    %1396 = vmatmul.mubr.bf16.gmra.mxu0 %v675
    %v1397 = vpop.f32.mrf.mxu0
    %v1398 = vadd.f32 0.0, %v1397
    %v1399 = vpop.f32.mrf.mxu0
    %v1400 = vpop.f32.mrf.mxu0
    %v1401 = vadd.f32 0.0, %v1400
    %v1402 = vpop.f32.mrf.mxu0
    %1403 = vmatprep.mubr.bf16.mxu0 %v678
    %1404 = vmatmul.mubr.bf16.gmra.mxu0 %v677
    %v1405 = vpop.f32.mrf.mxu0
    %v1406 = vadd.f32 0.0, %v1405
    %v1407 = vpop.f32.mrf.mxu0
    %v1408 = vpop.f32.mrf.mxu0
    %v1409 = vadd.f32 0.0, %v1408
    %v1410 = vpop.f32.mrf.mxu0
    %1411 = vmatprep.mubr.bf16.mxu0 %v680
    %1412 = vmatmul.mubr.bf16.gmra.mxu0 %v679
    %v1413 = vpop.f32.mrf.mxu0
    %v1414 = vadd.f32 0.0, %v1413
    %v1415 = vpop.f32.mrf.mxu0
    %v1416 = vpop.f32.mrf.mxu0
    %v1417 = vadd.f32 0.0, %v1416
    %v1418 = vpop.f32.mrf.mxu0
    %1419 = vmatprep.mubr.bf16.mxu0 %v682
    %1420 = vmatmul.mubr.bf16.gmra.mxu0 %v681
    %v1421 = vpop.f32.mrf.mxu0
    %v1422 = vadd.f32 0.0, %v1421
    %v1423 = vpop.f32.mrf.mxu0
    %v1424 = vpop.f32.mrf.mxu0
    %v1425 = vadd.f32 0.0, %v1424
    %v1426 = vpop.f32.mrf.mxu0
    %1427 = vmatprep.mubr.bf16.mxu0 %v684
    %1428 = vmatmul.mubr.bf16.gmra.mxu0 %v683
    %v1429 = vpop.f32.mrf.mxu0
    %v1430 = vadd.f32 0.0, %v1429
    %v1431 = vpop.f32.mrf.mxu0
    %v1432 = vpop.f32.mrf.mxu0
    %v1433 = vadd.f32 0.0, %v1432
    %v1434 = vpop.f32.mrf.mxu0
    %1435 = vmatprep.mubr.bf16.mxu0 %v686
    %1436 = vmatmul.mubr.bf16.gmra.mxu0 %v685
    %v1437 = vpop.f32.mrf.mxu0
    %v1438 = vadd.f32 0.0, %v1437
    %v1439 = vpop.f32.mrf.mxu0
    %v1440 = vpop.f32.mrf.mxu0
    %v1441 = vadd.f32 0.0, %v1440
    %v1442 = vpop.f32.mrf.mxu0
    %1443 = vmatprep.mubr.bf16.mxu0 %v688
    %1444 = vmatmul.mubr.bf16.gmra.mxu0 %v687
    %v1445 = vpop.f32.mrf.mxu0
    %v1446 = vadd.f32 0.0, %v1445
    %v1447 = vpop.f32.mrf.mxu0
    %v1448 = vpop.f32.mrf.mxu0
    %v1449 = vadd.f32 0.0, %v1448
    %v1450 = vpop.f32.mrf.mxu0
    %1451 = vmatprep.mubr.bf16.mxu0 %v690
    %1452 = vmatmul.mubr.bf16.gmra.mxu0 %v689
    %v1453 = vpop.f32.mrf.mxu0
    %v1454 = vadd.f32 0.0, %v1453
    %v1455 = vpop.f32.mrf.mxu0
    %v1456 = vpop.f32.mrf.mxu0
    %v1457 = vadd.f32 0.0, %v1456
    %v1458 = vpop.f32.mrf.mxu0
    %1459 = vdwg.mxu0
    %v1460 = vld [vmem:[%s2] sm:$0x1]
    %v1462 = vlaneseq
    %v1463 = vshrl.u32 %v1462, 7
    %v1464 = vsub.s32 0, %v1463
    %v1465 = vrot.slane %v1460, %v1464
    %v1467 = vmul.f32 %v950, %v1465
    %v1468 = vmul.f32 %v953, %v1465
    %v1469 = vmul.f32 %v958, %v1465
    %v1470 = vmul.f32 %v961, %v1465
    %v1471 = vmul.f32 %v966, %v1465
    %v1472 = vmul.f32 %v969, %v1465
    %v1473 = vmul.f32 %v974, %v1465
    %v1474 = vmul.f32 %v977, %v1465
    %v1475 = vmul.f32 %v982, %v1465
    %v1476 = vmul.f32 %v985, %v1465
    %v1477 = vmul.f32 %v990, %v1465
    %v1478 = vmul.f32 %v993, %v1465
    %v1479 = vmul.f32 %v998, %v1465
    %v1480 = vmul.f32 %v1001, %v1465
    %v1481 = vmul.f32 %v1006, %v1465
    %v1482 = vmul.f32 %v1009, %v1465
    %v1483 = vmul.f32 %v1014, %v1465
    %v1484 = vmul.f32 %v1017, %v1465
    %v1485 = vmul.f32 %v1022, %v1465
    %v1486 = vmul.f32 %v1025, %v1465
    %v1487 = vmul.f32 %v1030, %v1465
    %v1488 = vmul.f32 %v1033, %v1465
    %v1489 = vmul.f32 %v1038, %v1465
    %v1490 = vmul.f32 %v1041, %v1465
    %v1491 = vmul.f32 %v1046, %v1465
    %v1492 = vmul.f32 %v1049, %v1465
    %v1493 = vmul.f32 %v1054, %v1465
    %v1494 = vmul.f32 %v1057, %v1465
    %v1495 = vmul.f32 %v1062, %v1465
    %v1496 = vmul.f32 %v1065, %v1465
    %v1497 = vmul.f32 %v1070, %v1465
    %v1498 = vmul.f32 %v1073, %v1465
    %v1499 = vmul.f32 %v1078, %v1465
    %v1500 = vmul.f32 %v1081, %v1465
    %v1501 = vmul.f32 %v1086, %v1465
    %v1502 = vmul.f32 %v1089, %v1465
    %v1503 = vmul.f32 %v1094, %v1465
    %v1504 = vmul.f32 %v1097, %v1465
    %v1505 = vmul.f32 %v1102, %v1465
    %v1506 = vmul.f32 %v1105, %v1465
    %v1507 = vmul.f32 %v1110, %v1465
    %v1508 = vmul.f32 %v1113, %v1465
    %v1509 = vmul.f32 %v1118, %v1465
    %v1510 = vmul.f32 %v1121, %v1465
    %v1511 = vmul.f32 %v1126, %v1465
    %v1512 = vmul.f32 %v1129, %v1465
    %v1513 = vmul.f32 %v1134, %v1465
    %v1514 = vmul.f32 %v1137, %v1465
    %v1515 = vmul.f32 %v1142, %v1465
    %v1516 = vmul.f32 %v1145, %v1465
    %v1517 = vmul.f32 %v1150, %v1465
    %v1518 = vmul.f32 %v1153, %v1465
    %v1519 = vmul.f32 %v1158, %v1465
    %v1520 = vmul.f32 %v1161, %v1465
    %v1521 = vmul.f32 %v1166, %v1465
    %v1522 = vmul.f32 %v1169, %v1465
    %v1523 = vmul.f32 %v1174, %v1465
    %v1524 = vmul.f32 %v1177, %v1465
    %v1525 = vmul.f32 %v1182, %v1465
    %v1526 = vmul.f32 %v1185, %v1465
    %v1527 = vmul.f32 %v1190, %v1465
    %v1528 = vmul.f32 %v1193, %v1465
    %v1529 = vmul.f32 %v1198, %v1465
    %v1530 = vmul.f32 %v1201, %v1465
    %v1531 = vmul.f32 %v1206, %v1465
    %v1532 = vmul.f32 %v1209, %v1465
    %v1533 = vmul.f32 %v1214, %v1465
    %v1534 = vmul.f32 %v1217, %v1465
    %v1535 = vmul.f32 %v1222, %v1465
    %v1536 = vmul.f32 %v1225, %v1465
    %v1537 = vmul.f32 %v1230, %v1465
    %v1538 = vmul.f32 %v1233, %v1465
    %v1539 = vmul.f32 %v1238, %v1465
    %v1540 = vmul.f32 %v1241, %v1465
    %v1541 = vmul.f32 %v1246, %v1465
    %v1542 = vmul.f32 %v1249, %v1465
    %v1543 = vmul.f32 %v1254, %v1465
    %v1544 = vmul.f32 %v1257, %v1465
    %v1545 = vmul.f32 %v1262, %v1465
    %v1546 = vmul.f32 %v1265, %v1465
    %v1547 = vmul.f32 %v1270, %v1465
    %v1548 = vmul.f32 %v1273, %v1465
    %v1549 = vmul.f32 %v1278, %v1465
    %v1550 = vmul.f32 %v1281, %v1465
    %v1551 = vmul.f32 %v1286, %v1465
    %v1552 = vmul.f32 %v1289, %v1465
    %v1553 = vmul.f32 %v1294, %v1465
    %v1554 = vmul.f32 %v1297, %v1465
    %v1555 = vmul.f32 %v1302, %v1465
    %v1556 = vmul.f32 %v1305, %v1465
    %v1557 = vmul.f32 %v1310, %v1465
    %v1558 = vmul.f32 %v1313, %v1465
    %v1559 = vmul.f32 %v1318, %v1465
    %v1560 = vmul.f32 %v1321, %v1465
    %v1561 = vmul.f32 %v1326, %v1465
    %v1562 = vmul.f32 %v1329, %v1465
    %v1563 = vmul.f32 %v1334, %v1465
    %v1564 = vmul.f32 %v1337, %v1465
    %v1565 = vmul.f32 %v1342, %v1465
    %v1566 = vmul.f32 %v1345, %v1465
    %v1567 = vmul.f32 %v1350, %v1465
    %v1568 = vmul.f32 %v1353, %v1465
    %v1569 = vmul.f32 %v1358, %v1465
    %v1570 = vmul.f32 %v1361, %v1465
    %v1571 = vmul.f32 %v1366, %v1465
    %v1572 = vmul.f32 %v1369, %v1465
    %v1573 = vmul.f32 %v1374, %v1465
    %v1574 = vmul.f32 %v1377, %v1465
    %v1575 = vmul.f32 %v1382, %v1465
    %v1576 = vmul.f32 %v1385, %v1465
    %v1577 = vmul.f32 %v1390, %v1465
    %v1578 = vmul.f32 %v1393, %v1465
    %v1579 = vmul.f32 %v1398, %v1465
    %v1580 = vmul.f32 %v1401, %v1465
    %v1581 = vmul.f32 %v1406, %v1465
    %v1582 = vmul.f32 %v1409, %v1465
    %v1583 = vmul.f32 %v1414, %v1465
    %v1584 = vmul.f32 %v1417, %v1465
    %v1585 = vmul.f32 %v1422, %v1465
    %v1586 = vmul.f32 %v1425, %v1465
    %v1587 = vmul.f32 %v1430, %v1465
    %v1588 = vmul.f32 %v1433, %v1465
    %v1589 = vmul.f32 %v1438, %v1465
    %v1590 = vmul.f32 %v1441, %v1465
    %v1591 = vmul.f32 %v1446, %v1465
    %v1592 = vmul.f32 %v1449, %v1465
    %v1593 = vmul.f32 %v1454, %v1465
    %v1594 = vmul.f32 %v1457, %v1465
    %v1595 = vld [vmem:[%s3] sm:$0x1]
    %v1597 = vlaneseq
    %v1598 = vshrl.u32 %v1597, 7
    %v1599 = vsub.s32 0, %v1598
    %v1600 = vrot.slane %v1595, %v1599
    %v1602 = vadd.f32 %v1467, %v1600
    %v1603 = vadd.f32 %v1468, %v1600
    %v1604 = vadd.f32 %v1469, %v1600
    %v1605 = vadd.f32 %v1470, %v1600
    %v1606 = vadd.f32 %v1471, %v1600
    %v1607 = vadd.f32 %v1472, %v1600
    %v1608 = vadd.f32 %v1473, %v1600
    %v1609 = vadd.f32 %v1474, %v1600
    %v1610 = vadd.f32 %v1475, %v1600
    %v1611 = vadd.f32 %v1476, %v1600
    %v1612 = vadd.f32 %v1477, %v1600
    %v1613 = vadd.f32 %v1478, %v1600
    %v1614 = vadd.f32 %v1479, %v1600
    %v1615 = vadd.f32 %v1480, %v1600
    %v1616 = vadd.f32 %v1481, %v1600
    %v1617 = vadd.f32 %v1482, %v1600
    %v1618 = vadd.f32 %v1483, %v1600
    %v1619 = vadd.f32 %v1484, %v1600
    %v1620 = vadd.f32 %v1485, %v1600
    %v1621 = vadd.f32 %v1486, %v1600
    %v1622 = vadd.f32 %v1487, %v1600
    %v1623 = vadd.f32 %v1488, %v1600
    %v1624 = vadd.f32 %v1489, %v1600
    %v1625 = vadd.f32 %v1490, %v1600
    %v1626 = vadd.f32 %v1491, %v1600
    %v1627 = vadd.f32 %v1492, %v1600
    %v1628 = vadd.f32 %v1493, %v1600
    %v1629 = vadd.f32 %v1494, %v1600
    %v1630 = vadd.f32 %v1495, %v1600
    %v1631 = vadd.f32 %v1496, %v1600
    %v1632 = vadd.f32 %v1497, %v1600
    %v1633 = vadd.f32 %v1498, %v1600
    %v1634 = vadd.f32 %v1499, %v1600
    %v1635 = vadd.f32 %v1500, %v1600
    %v1636 = vadd.f32 %v1501, %v1600
    %v1637 = vadd.f32 %v1502, %v1600
    %v1638 = vadd.f32 %v1503, %v1600
    %v1639 = vadd.f32 %v1504, %v1600
    %v1640 = vadd.f32 %v1505, %v1600
    %v1641 = vadd.f32 %v1506, %v1600
    %v1642 = vadd.f32 %v1507, %v1600
    %v1643 = vadd.f32 %v1508, %v1600
    %v1644 = vadd.f32 %v1509, %v1600
    %v1645 = vadd.f32 %v1510, %v1600
    %v1646 = vadd.f32 %v1511, %v1600
    %v1647 = vadd.f32 %v1512, %v1600
    %v1648 = vadd.f32 %v1513, %v1600
    %v1649 = vadd.f32 %v1514, %v1600
    %v1650 = vadd.f32 %v1515, %v1600
    %v1651 = vadd.f32 %v1516, %v1600
    %v1652 = vadd.f32 %v1517, %v1600
    %v1653 = vadd.f32 %v1518, %v1600
    %v1654 = vadd.f32 %v1519, %v1600
    %v1655 = vadd.f32 %v1520, %v1600
    %v1656 = vadd.f32 %v1521, %v1600
    %v1657 = vadd.f32 %v1522, %v1600
    %v1658 = vadd.f32 %v1523, %v1600
    %v1659 = vadd.f32 %v1524, %v1600
    %v1660 = vadd.f32 %v1525, %v1600
    %v1661 = vadd.f32 %v1526, %v1600
    %v1662 = vadd.f32 %v1527, %v1600
    %v1663 = vadd.f32 %v1528, %v1600
    %v1664 = vadd.f32 %v1529, %v1600
    %v1665 = vadd.f32 %v1530, %v1600
    %v1666 = vadd.f32 %v1531, %v1600
    %v1667 = vadd.f32 %v1532, %v1600
    %v1668 = vadd.f32 %v1533, %v1600
    %v1669 = vadd.f32 %v1534, %v1600
    %v1670 = vadd.f32 %v1535, %v1600
    %v1671 = vadd.f32 %v1536, %v1600
    %v1672 = vadd.f32 %v1537, %v1600
    %v1673 = vadd.f32 %v1538, %v1600
    %v1674 = vadd.f32 %v1539, %v1600
    %v1675 = vadd.f32 %v1540, %v1600
    %v1676 = vadd.f32 %v1541, %v1600
    %v1677 = vadd.f32 %v1542, %v1600
    %v1678 = vadd.f32 %v1543, %v1600
    %v1679 = vadd.f32 %v1544, %v1600
    %v1680 = vadd.f32 %v1545, %v1600
    %v1681 = vadd.f32 %v1546, %v1600
    %v1682 = vadd.f32 %v1547, %v1600
    %v1683 = vadd.f32 %v1548, %v1600
    %v1684 = vadd.f32 %v1549, %v1600
    %v1685 = vadd.f32 %v1550, %v1600
    %v1686 = vadd.f32 %v1551, %v1600
    %v1687 = vadd.f32 %v1552, %v1600
    %v1688 = vadd.f32 %v1553, %v1600
    %v1689 = vadd.f32 %v1554, %v1600
    %v1690 = vadd.f32 %v1555, %v1600
    %v1691 = vadd.f32 %v1556, %v1600
    %v1692 = vadd.f32 %v1557, %v1600
    %v1693 = vadd.f32 %v1558, %v1600
    %v1694 = vadd.f32 %v1559, %v1600
    %v1695 = vadd.f32 %v1560, %v1600
    %v1696 = vadd.f32 %v1561, %v1600
    %v1697 = vadd.f32 %v1562, %v1600
    %v1698 = vadd.f32 %v1563, %v1600
    %v1699 = vadd.f32 %v1564, %v1600
    %v1700 = vadd.f32 %v1565, %v1600
    %v1701 = vadd.f32 %v1566, %v1600
    %v1702 = vadd.f32 %v1567, %v1600
    %v1703 = vadd.f32 %v1568, %v1600
    %v1704 = vadd.f32 %v1569, %v1600
    %v1705 = vadd.f32 %v1570, %v1600
    %v1706 = vadd.f32 %v1571, %v1600
    %v1707 = vadd.f32 %v1572, %v1600
    %v1708 = vadd.f32 %v1573, %v1600
    %v1709 = vadd.f32 %v1574, %v1600
    %v1710 = vadd.f32 %v1575, %v1600
    %v1711 = vadd.f32 %v1576, %v1600
    %v1712 = vadd.f32 %v1577, %v1600
    %v1713 = vadd.f32 %v1578, %v1600
    %v1714 = vadd.f32 %v1579, %v1600
    %v1715 = vadd.f32 %v1580, %v1600
    %v1716 = vadd.f32 %v1581, %v1600
    %v1717 = vadd.f32 %v1582, %v1600
    %v1718 = vadd.f32 %v1583, %v1600
    %v1719 = vadd.f32 %v1584, %v1600
    %v1720 = vadd.f32 %v1585, %v1600
    %v1721 = vadd.f32 %v1586, %v1600
    %v1722 = vadd.f32 %v1587, %v1600
    %v1723 = vadd.f32 %v1588, %v1600
    %v1724 = vadd.f32 %v1589, %v1600
    %v1725 = vadd.f32 %v1590, %v1600
    %v1726 = vadd.f32 %v1591, %v1600
    %v1727 = vadd.f32 %v1592, %v1600
    %v1728 = vadd.f32 %v1593, %v1600
    %v1729 = vadd.f32 %v1594, %v1600
    %v1730 = vmax.f32 %v1602, 0.0
    %v1731 = vmax.f32 %v1603, 0.0
    %v1732 = vmax.f32 %v1604, 0.0
    %v1733 = vmax.f32 %v1605, 0.0
    %v1734 = vmax.f32 %v1606, 0.0
    %v1735 = vmax.f32 %v1607, 0.0
    %v1736 = vmax.f32 %v1608, 0.0
    %v1737 = vmax.f32 %v1609, 0.0
    %v1738 = vmax.f32 %v1610, 0.0
    %v1739 = vmax.f32 %v1611, 0.0
    %v1740 = vmax.f32 %v1612, 0.0
    %v1741 = vmax.f32 %v1613, 0.0
    %v1742 = vmax.f32 %v1614, 0.0
    %v1743 = vmax.f32 %v1615, 0.0
    %v1744 = vmax.f32 %v1616, 0.0
    %v1745 = vmax.f32 %v1617, 0.0
    %v1746 = vmax.f32 %v1618, 0.0
    %v1747 = vmax.f32 %v1619, 0.0
    %v1748 = vmax.f32 %v1620, 0.0
    %v1749 = vmax.f32 %v1621, 0.0
    %v1750 = vmax.f32 %v1622, 0.0
    %v1751 = vmax.f32 %v1623, 0.0
    %v1752 = vmax.f32 %v1624, 0.0
    %v1753 = vmax.f32 %v1625, 0.0
    %v1754 = vmax.f32 %v1626, 0.0
    %v1755 = vmax.f32 %v1627, 0.0
    %v1756 = vmax.f32 %v1628, 0.0
    %v1757 = vmax.f32 %v1629, 0.0
    %v1758 = vmax.f32 %v1630, 0.0
    %v1759 = vmax.f32 %v1631, 0.0
    %v1760 = vmax.f32 %v1632, 0.0
    %v1761 = vmax.f32 %v1633, 0.0
    %v1762 = vmax.f32 %v1634, 0.0
    %v1763 = vmax.f32 %v1635, 0.0
    %v1764 = vmax.f32 %v1636, 0.0
    %v1765 = vmax.f32 %v1637, 0.0
    %v1766 = vmax.f32 %v1638, 0.0
    %v1767 = vmax.f32 %v1639, 0.0
    %v1768 = vmax.f32 %v1640, 0.0
    %v1769 = vmax.f32 %v1641, 0.0
    %v1770 = vmax.f32 %v1642, 0.0
    %v1771 = vmax.f32 %v1643, 0.0
    %v1772 = vmax.f32 %v1644, 0.0
    %v1773 = vmax.f32 %v1645, 0.0
    %v1774 = vmax.f32 %v1646, 0.0
    %v1775 = vmax.f32 %v1647, 0.0
    %v1776 = vmax.f32 %v1648, 0.0
    %v1777 = vmax.f32 %v1649, 0.0
    %v1778 = vmax.f32 %v1650, 0.0
    %v1779 = vmax.f32 %v1651, 0.0
    %v1780 = vmax.f32 %v1652, 0.0
    %v1781 = vmax.f32 %v1653, 0.0
    %v1782 = vmax.f32 %v1654, 0.0
    %v1783 = vmax.f32 %v1655, 0.0
    %v1784 = vmax.f32 %v1656, 0.0
    %v1785 = vmax.f32 %v1657, 0.0
    %v1786 = vmax.f32 %v1658, 0.0
    %v1787 = vmax.f32 %v1659, 0.0
    %v1788 = vmax.f32 %v1660, 0.0
    %v1789 = vmax.f32 %v1661, 0.0
    %v1790 = vmax.f32 %v1662, 0.0
    %v1791 = vmax.f32 %v1663, 0.0
    %v1792 = vmax.f32 %v1664, 0.0
    %v1793 = vmax.f32 %v1665, 0.0
    %v1794 = vmax.f32 %v1666, 0.0
    %v1795 = vmax.f32 %v1667, 0.0
    %v1796 = vmax.f32 %v1668, 0.0
    %v1797 = vmax.f32 %v1669, 0.0
    %v1798 = vmax.f32 %v1670, 0.0
    %v1799 = vmax.f32 %v1671, 0.0
    %v1800 = vmax.f32 %v1672, 0.0
    %v1801 = vmax.f32 %v1673, 0.0
    %v1802 = vmax.f32 %v1674, 0.0
    %v1803 = vmax.f32 %v1675, 0.0
    %v1804 = vmax.f32 %v1676, 0.0
    %v1805 = vmax.f32 %v1677, 0.0
    %v1806 = vmax.f32 %v1678, 0.0
    %v1807 = vmax.f32 %v1679, 0.0
    %v1808 = vmax.f32 %v1680, 0.0
    %v1809 = vmax.f32 %v1681, 0.0
    %v1810 = vmax.f32 %v1682, 0.0
    %v1811 = vmax.f32 %v1683, 0.0
    %v1812 = vmax.f32 %v1684, 0.0
    %v1813 = vmax.f32 %v1685, 0.0
    %v1814 = vmax.f32 %v1686, 0.0
    %v1815 = vmax.f32 %v1687, 0.0
    %v1816 = vmax.f32 %v1688, 0.0
    %v1817 = vmax.f32 %v1689, 0.0
    %v1818 = vmax.f32 %v1690, 0.0
    %v1819 = vmax.f32 %v1691, 0.0
    %v1820 = vmax.f32 %v1692, 0.0
    %v1821 = vmax.f32 %v1693, 0.0
    %v1822 = vmax.f32 %v1694, 0.0
    %v1823 = vmax.f32 %v1695, 0.0
    %v1824 = vmax.f32 %v1696, 0.0
    %v1825 = vmax.f32 %v1697, 0.0
    %v1826 = vmax.f32 %v1698, 0.0
    %v1827 = vmax.f32 %v1699, 0.0
    %v1828 = vmax.f32 %v1700, 0.0
    %v1829 = vmax.f32 %v1701, 0.0
    %v1830 = vmax.f32 %v1702, 0.0
    %v1831 = vmax.f32 %v1703, 0.0
    %v1832 = vmax.f32 %v1704, 0.0
    %v1833 = vmax.f32 %v1705, 0.0
    %v1834 = vmax.f32 %v1706, 0.0
    %v1835 = vmax.f32 %v1707, 0.0
    %v1836 = vmax.f32 %v1708, 0.0
    %v1837 = vmax.f32 %v1709, 0.0
    %v1838 = vmax.f32 %v1710, 0.0
    %v1839 = vmax.f32 %v1711, 0.0
    %v1840 = vmax.f32 %v1712, 0.0
    %v1841 = vmax.f32 %v1713, 0.0
    %v1842 = vmax.f32 %v1714, 0.0
    %v1843 = vmax.f32 %v1715, 0.0
    %v1844 = vmax.f32 %v1716, 0.0
    %v1845 = vmax.f32 %v1717, 0.0
    %v1846 = vmax.f32 %v1718, 0.0
    %v1847 = vmax.f32 %v1719, 0.0
    %v1848 = vmax.f32 %v1720, 0.0
    %v1849 = vmax.f32 %v1721, 0.0
    %v1850 = vmax.f32 %v1722, 0.0
    %v1851 = vmax.f32 %v1723, 0.0
    %v1852 = vmax.f32 %v1724, 0.0
    %v1853 = vmax.f32 %v1725, 0.0
    %v1854 = vmax.f32 %v1726, 0.0
    %v1855 = vmax.f32 %v1727, 0.0
    %v1856 = vmax.f32 %v1728, 0.0
    %v1857 = vmax.f32 %v1729, 0.0
    %v1858 = vpack.c.bf16 %v1731, %v1730
    %v1859 = vpack.c.bf16 %v1733, %v1732
    %v1860 = vpack.c.bf16 %v1735, %v1734
    %v1861 = vpack.c.bf16 %v1737, %v1736
    %v1862 = vpack.c.bf16 %v1739, %v1738
    %v1863 = vpack.c.bf16 %v1741, %v1740
    %v1864 = vpack.c.bf16 %v1743, %v1742
    %v1865 = vpack.c.bf16 %v1745, %v1744
    %v1866 = vpack.c.bf16 %v1747, %v1746
    %v1867 = vpack.c.bf16 %v1749, %v1748
    %v1868 = vpack.c.bf16 %v1751, %v1750
    %v1869 = vpack.c.bf16 %v1753, %v1752
    %v1870 = vpack.c.bf16 %v1755, %v1754
    %v1871 = vpack.c.bf16 %v1757, %v1756
    %v1872 = vpack.c.bf16 %v1759, %v1758
    %v1873 = vpack.c.bf16 %v1761, %v1760
    %v1874 = vpack.c.bf16 %v1763, %v1762
    %v1875 = vpack.c.bf16 %v1765, %v1764
    %v1876 = vpack.c.bf16 %v1767, %v1766
    %v1877 = vpack.c.bf16 %v1769, %v1768
    %v1878 = vpack.c.bf16 %v1771, %v1770
    %v1879 = vpack.c.bf16 %v1773, %v1772
    %v1880 = vpack.c.bf16 %v1775, %v1774
    %v1881 = vpack.c.bf16 %v1777, %v1776
    %v1882 = vpack.c.bf16 %v1779, %v1778
    %v1883 = vpack.c.bf16 %v1781, %v1780
    %v1884 = vpack.c.bf16 %v1783, %v1782
    %v1885 = vpack.c.bf16 %v1785, %v1784
    %v1886 = vpack.c.bf16 %v1787, %v1786
    %v1887 = vpack.c.bf16 %v1789, %v1788
    %v1888 = vpack.c.bf16 %v1791, %v1790
    %v1889 = vpack.c.bf16 %v1793, %v1792
    %v1890 = vpack.c.bf16 %v1795, %v1794
    %v1891 = vpack.c.bf16 %v1797, %v1796
    %v1892 = vpack.c.bf16 %v1799, %v1798
    %v1893 = vpack.c.bf16 %v1801, %v1800
    %v1894 = vpack.c.bf16 %v1803, %v1802
    %v1895 = vpack.c.bf16 %v1805, %v1804
    %v1896 = vpack.c.bf16 %v1807, %v1806
    %v1897 = vpack.c.bf16 %v1809, %v1808
    %v1898 = vpack.c.bf16 %v1811, %v1810
    %v1899 = vpack.c.bf16 %v1813, %v1812
    %v1900 = vpack.c.bf16 %v1815, %v1814
    %v1901 = vpack.c.bf16 %v1817, %v1816
    %v1902 = vpack.c.bf16 %v1819, %v1818
    %v1903 = vpack.c.bf16 %v1821, %v1820
    %v1904 = vpack.c.bf16 %v1823, %v1822
    %v1905 = vpack.c.bf16 %v1825, %v1824
    %v1906 = vpack.c.bf16 %v1827, %v1826
    %v1907 = vpack.c.bf16 %v1829, %v1828
    %v1908 = vpack.c.bf16 %v1831, %v1830
    %v1909 = vpack.c.bf16 %v1833, %v1832
    %v1910 = vpack.c.bf16 %v1835, %v1834
    %v1911 = vpack.c.bf16 %v1837, %v1836
    %v1912 = vpack.c.bf16 %v1839, %v1838
    %v1913 = vpack.c.bf16 %v1841, %v1840
    %v1914 = vpack.c.bf16 %v1843, %v1842
    %v1915 = vpack.c.bf16 %v1845, %v1844
    %v1916 = vpack.c.bf16 %v1847, %v1846
    %v1917 = vpack.c.bf16 %v1849, %v1848
    %v1918 = vpack.c.bf16 %v1851, %v1850
    %v1919 = vpack.c.bf16 %v1853, %v1852
    %v1920 = vpack.c.bf16 %v1855, %v1854
    %v1921 = vpack.c.bf16 %v1857, %v1856
    %v1986 = vunpack.c.l.b16 %v1858
    %v1987 = vunpack.c.h.b16 %v1858
    %v1988 = vunpack.c.l.b16 %v1859
    %v1989 = vunpack.c.h.b16 %v1859
    %v1990 = vunpack.c.l.b16 %v1860
    %v1991 = vunpack.c.h.b16 %v1860
    %v1992 = vunpack.c.l.b16 %v1861
    %v1993 = vunpack.c.h.b16 %v1861
    %v1994 = vunpack.c.l.b16 %v1862
    %v1995 = vunpack.c.h.b16 %v1862
    %v1996 = vunpack.c.l.b16 %v1863
    %v1997 = vunpack.c.h.b16 %v1863
    %v1998 = vunpack.c.l.b16 %v1864
    %v1999 = vunpack.c.h.b16 %v1864
    %v2000 = vunpack.c.l.b16 %v1865
    %v2001 = vunpack.c.h.b16 %v1865
    %v2002 = vunpack.c.l.b16 %v1866
    %v2003 = vunpack.c.h.b16 %v1866
    %v2004 = vunpack.c.l.b16 %v1867
    %v2005 = vunpack.c.h.b16 %v1867
    %v2006 = vunpack.c.l.b16 %v1868
    %v2007 = vunpack.c.h.b16 %v1868
    %v2008 = vunpack.c.l.b16 %v1869
    %v2009 = vunpack.c.h.b16 %v1869
    %v2010 = vunpack.c.l.b16 %v1870
    %v2011 = vunpack.c.h.b16 %v1870
    %v2012 = vunpack.c.l.b16 %v1871
    %v2013 = vunpack.c.h.b16 %v1871
    %v2014 = vunpack.c.l.b16 %v1872
    %v2015 = vunpack.c.h.b16 %v1872
    %v2016 = vunpack.c.l.b16 %v1873
    %v2017 = vunpack.c.h.b16 %v1873
    %v2018 = vunpack.c.l.b16 %v1874
    %v2019 = vunpack.c.h.b16 %v1874
    %v2020 = vunpack.c.l.b16 %v1875
    %v2021 = vunpack.c.h.b16 %v1875
    %v2022 = vunpack.c.l.b16 %v1876
    %v2023 = vunpack.c.h.b16 %v1876
    %v2024 = vunpack.c.l.b16 %v1877
    %v2025 = vunpack.c.h.b16 %v1877
    %v2026 = vunpack.c.l.b16 %v1878
    %v2027 = vunpack.c.h.b16 %v1878
    %v2028 = vunpack.c.l.b16 %v1879
    %v2029 = vunpack.c.h.b16 %v1879
    %v2030 = vunpack.c.l.b16 %v1880
    %v2031 = vunpack.c.h.b16 %v1880
    %v2032 = vunpack.c.l.b16 %v1881
    %v2033 = vunpack.c.h.b16 %v1881
    %v2034 = vunpack.c.l.b16 %v1882
    %v2035 = vunpack.c.h.b16 %v1882
    %v2036 = vunpack.c.l.b16 %v1883
    %v2037 = vunpack.c.h.b16 %v1883
    %v2038 = vunpack.c.l.b16 %v1884
    %v2039 = vunpack.c.h.b16 %v1884
    %v2040 = vunpack.c.l.b16 %v1885
    %v2041 = vunpack.c.h.b16 %v1885
    %v2042 = vunpack.c.l.b16 %v1886
    %v2043 = vunpack.c.h.b16 %v1886
    %v2044 = vunpack.c.l.b16 %v1887
    %v2045 = vunpack.c.h.b16 %v1887
    %v2046 = vunpack.c.l.b16 %v1888
    %v2047 = vunpack.c.h.b16 %v1888
    %v2048 = vunpack.c.l.b16 %v1889
    %v2049 = vunpack.c.h.b16 %v1889
    %v2050 = vunpack.c.l.b16 %v1890
    %v2051 = vunpack.c.h.b16 %v1890
    %v2052 = vunpack.c.l.b16 %v1891
    %v2053 = vunpack.c.h.b16 %v1891
    %v2054 = vunpack.c.l.b16 %v1892
    %v2055 = vunpack.c.h.b16 %v1892
    %v2056 = vunpack.c.l.b16 %v1893
    %v2057 = vunpack.c.h.b16 %v1893
    %v2058 = vunpack.c.l.b16 %v1894
    %v2059 = vunpack.c.h.b16 %v1894
    %v2060 = vunpack.c.l.b16 %v1895
    %v2061 = vunpack.c.h.b16 %v1895
    %v2062 = vunpack.c.l.b16 %v1896
    %v2063 = vunpack.c.h.b16 %v1896
    %v2064 = vunpack.c.l.b16 %v1897
    %v2065 = vunpack.c.h.b16 %v1897
    %v2066 = vunpack.c.l.b16 %v1898
    %v2067 = vunpack.c.h.b16 %v1898
    %v2068 = vunpack.c.l.b16 %v1899
    %v2069 = vunpack.c.h.b16 %v1899
    %v2070 = vunpack.c.l.b16 %v1900
    %v2071 = vunpack.c.h.b16 %v1900
    %v2072 = vunpack.c.l.b16 %v1901
    %v2073 = vunpack.c.h.b16 %v1901
    %v2074 = vunpack.c.l.b16 %v1902
    %v2075 = vunpack.c.h.b16 %v1902
    %v2076 = vunpack.c.l.b16 %v1903
    %v2077 = vunpack.c.h.b16 %v1903
    %v2078 = vunpack.c.l.b16 %v1904
    %v2079 = vunpack.c.h.b16 %v1904
    %v2080 = vunpack.c.l.b16 %v1905
    %v2081 = vunpack.c.h.b16 %v1905
    %v2082 = vunpack.c.l.b16 %v1906
    %v2083 = vunpack.c.h.b16 %v1906
    %v2084 = vunpack.c.l.b16 %v1907
    %v2085 = vunpack.c.h.b16 %v1907
    %v2086 = vunpack.c.l.b16 %v1908
    %v2087 = vunpack.c.h.b16 %v1908
    %v2088 = vunpack.c.l.b16 %v1909
    %v2089 = vunpack.c.h.b16 %v1909
    %v2090 = vunpack.c.l.b16 %v1910
    %v2091 = vunpack.c.h.b16 %v1910
    %v2092 = vunpack.c.l.b16 %v1911
    %v2093 = vunpack.c.h.b16 %v1911
    %v2094 = vunpack.c.l.b16 %v1912
    %v2095 = vunpack.c.h.b16 %v1912
    %v2096 = vunpack.c.l.b16 %v1913
    %v2097 = vunpack.c.h.b16 %v1913
    %v2098 = vunpack.c.l.b16 %v1914
    %v2099 = vunpack.c.h.b16 %v1914
    %v2100 = vunpack.c.l.b16 %v1915
    %v2101 = vunpack.c.h.b16 %v1915
    %v2102 = vunpack.c.l.b16 %v1916
    %v2103 = vunpack.c.h.b16 %v1916
    %v2104 = vunpack.c.l.b16 %v1917
    %v2105 = vunpack.c.h.b16 %v1917
    %v2106 = vunpack.c.l.b16 %v1918
    %v2107 = vunpack.c.h.b16 %v1918
    %v2108 = vunpack.c.l.b16 %v1919
    %v2109 = vunpack.c.h.b16 %v1919
    %v2110 = vunpack.c.l.b16 %v1920
    %v2111 = vunpack.c.h.b16 %v1920
    %v2112 = vunpack.c.l.b16 %v1921
    %v2113 = vunpack.c.h.b16 %v1921
    %v2114 = vpack.c.b16 %v1986, %v1986
    %v2115 = vpack.c.b16 %v1987, %v1987
    %v2116 = vpack.c.b16 %v1988, %v1988
    %v2117 = vpack.c.b16 %v1989, %v1989
    %v2118 = vpack.c.b16 %v1990, %v1990
    %v2119 = vpack.c.b16 %v1991, %v1991
    %v2120 = vpack.c.b16 %v1992, %v1992
    %v2121 = vpack.c.b16 %v1993, %v1993
    %v2122 = vpack.c.b16 %v1994, %v1994
    %v2123 = vpack.c.b16 %v1995, %v1995
    %v2124 = vpack.c.b16 %v1996, %v1996
    %v2125 = vpack.c.b16 %v1997, %v1997
    %v2126 = vpack.c.b16 %v1998, %v1998
    %v2127 = vpack.c.b16 %v1999, %v1999
    %v2128 = vpack.c.b16 %v2000, %v2000
    %v2129 = vpack.c.b16 %v2001, %v2001
    %v2130 = vpack.c.b16 %v2002, %v2002
    %v2131 = vpack.c.b16 %v2003, %v2003
    %v2132 = vpack.c.b16 %v2004, %v2004
    %v2133 = vpack.c.b16 %v2005, %v2005
    %v2134 = vpack.c.b16 %v2006, %v2006
    %v2135 = vpack.c.b16 %v2007, %v2007
    %v2136 = vpack.c.b16 %v2008, %v2008
    %v2137 = vpack.c.b16 %v2009, %v2009
    %v2138 = vpack.c.b16 %v2010, %v2010
    %v2139 = vpack.c.b16 %v2011, %v2011
    %v2140 = vpack.c.b16 %v2012, %v2012
    %v2141 = vpack.c.b16 %v2013, %v2013
    %v2142 = vpack.c.b16 %v2014, %v2014
    %v2143 = vpack.c.b16 %v2015, %v2015
    %v2144 = vpack.c.b16 %v2016, %v2016
    %v2145 = vpack.c.b16 %v2017, %v2017
    %v2146 = vpack.c.b16 %v2018, %v2018
    %v2147 = vpack.c.b16 %v2019, %v2019
    %v2148 = vpack.c.b16 %v2020, %v2020
    %v2149 = vpack.c.b16 %v2021, %v2021
    %v2150 = vpack.c.b16 %v2022, %v2022
    %v2151 = vpack.c.b16 %v2023, %v2023
    %v2152 = vpack.c.b16 %v2024, %v2024
    %v2153 = vpack.c.b16 %v2025, %v2025
    %v2154 = vpack.c.b16 %v2026, %v2026
    %v2155 = vpack.c.b16 %v2027, %v2027
    %v2156 = vpack.c.b16 %v2028, %v2028
    %v2157 = vpack.c.b16 %v2029, %v2029
    %v2158 = vpack.c.b16 %v2030, %v2030
    %v2159 = vpack.c.b16 %v2031, %v2031
    %v2160 = vpack.c.b16 %v2032, %v2032
    %v2161 = vpack.c.b16 %v2033, %v2033
    %v2162 = vpack.c.b16 %v2034, %v2034
    %v2163 = vpack.c.b16 %v2035, %v2035
    %v2164 = vpack.c.b16 %v2036, %v2036
    %v2165 = vpack.c.b16 %v2037, %v2037
    %v2166 = vpack.c.b16 %v2038, %v2038
    %v2167 = vpack.c.b16 %v2039, %v2039
    %v2168 = vpack.c.b16 %v2040, %v2040
    %v2169 = vpack.c.b16 %v2041, %v2041
    %v2170 = vpack.c.b16 %v2042, %v2042
    %v2171 = vpack.c.b16 %v2043, %v2043
    %v2172 = vpack.c.b16 %v2044, %v2044
    %v2173 = vpack.c.b16 %v2045, %v2045
    %v2174 = vpack.c.b16 %v2046, %v2046
    %v2175 = vpack.c.b16 %v2047, %v2047
    %v2176 = vpack.c.b16 %v2048, %v2048
    %v2177 = vpack.c.b16 %v2049, %v2049
    %v2178 = vpack.c.b16 %v2050, %v2050
    %v2179 = vpack.c.b16 %v2051, %v2051
    %v2180 = vpack.c.b16 %v2052, %v2052
    %v2181 = vpack.c.b16 %v2053, %v2053
    %v2182 = vpack.c.b16 %v2054, %v2054
    %v2183 = vpack.c.b16 %v2055, %v2055
    %v2184 = vpack.c.b16 %v2056, %v2056
    %v2185 = vpack.c.b16 %v2057, %v2057
    %v2186 = vpack.c.b16 %v2058, %v2058
    %v2187 = vpack.c.b16 %v2059, %v2059
    %v2188 = vpack.c.b16 %v2060, %v2060
    %v2189 = vpack.c.b16 %v2061, %v2061
    %v2190 = vpack.c.b16 %v2062, %v2062
    %v2191 = vpack.c.b16 %v2063, %v2063
    %v2192 = vpack.c.b16 %v2064, %v2064
    %v2193 = vpack.c.b16 %v2065, %v2065
    %v2194 = vpack.c.b16 %v2066, %v2066
    %v2195 = vpack.c.b16 %v2067, %v2067
    %v2196 = vpack.c.b16 %v2068, %v2068
    %v2197 = vpack.c.b16 %v2069, %v2069
    %v2198 = vpack.c.b16 %v2070, %v2070
    %v2199 = vpack.c.b16 %v2071, %v2071
    %v2200 = vpack.c.b16 %v2072, %v2072
    %v2201 = vpack.c.b16 %v2073, %v2073
    %v2202 = vpack.c.b16 %v2074, %v2074
    %v2203 = vpack.c.b16 %v2075, %v2075
    %v2204 = vpack.c.b16 %v2076, %v2076
    %v2205 = vpack.c.b16 %v2077, %v2077
    %v2206 = vpack.c.b16 %v2078, %v2078
    %v2207 = vpack.c.b16 %v2079, %v2079
    %v2208 = vpack.c.b16 %v2080, %v2080
    %v2209 = vpack.c.b16 %v2081, %v2081
    %v2210 = vpack.c.b16 %v2082, %v2082
    %v2211 = vpack.c.b16 %v2083, %v2083
    %v2212 = vpack.c.b16 %v2084, %v2084
    %v2213 = vpack.c.b16 %v2085, %v2085
    %v2214 = vpack.c.b16 %v2086, %v2086
    %v2215 = vpack.c.b16 %v2087, %v2087
    %v2216 = vpack.c.b16 %v2088, %v2088
    %v2217 = vpack.c.b16 %v2089, %v2089
    %v2218 = vpack.c.b16 %v2090, %v2090
    %v2219 = vpack.c.b16 %v2091, %v2091
    %v2220 = vpack.c.b16 %v2092, %v2092
    %v2221 = vpack.c.b16 %v2093, %v2093
    %v2222 = vpack.c.b16 %v2094, %v2094
    %v2223 = vpack.c.b16 %v2095, %v2095
    %v2224 = vpack.c.b16 %v2096, %v2096
    %v2225 = vpack.c.b16 %v2097, %v2097
    %v2226 = vpack.c.b16 %v2098, %v2098
    %v2227 = vpack.c.b16 %v2099, %v2099
    %v2228 = vpack.c.b16 %v2100, %v2100
    %v2229 = vpack.c.b16 %v2101, %v2101
    %v2230 = vpack.c.b16 %v2102, %v2102
    %v2231 = vpack.c.b16 %v2103, %v2103
    %v2232 = vpack.c.b16 %v2104, %v2104
    %v2233 = vpack.c.b16 %v2105, %v2105
    %v2234 = vpack.c.b16 %v2106, %v2106
    %v2235 = vpack.c.b16 %v2107, %v2107
    %v2236 = vpack.c.b16 %v2108, %v2108
    %v2237 = vpack.c.b16 %v2109, %v2109
    %v2238 = vpack.c.b16 %v2110, %v2110
    %v2239 = vpack.c.b16 %v2111, %v2111
    %v2240 = vpack.c.b16 %v2112, %v2112
    %v2241 = vpack.c.b16 %v2113, %v2113
    %2370 = vst [vmem:[#allocation2] sm:$0xf] %v2114
    %2371 = vst [vmem:[#allocation2 + $0x4] sm:$0xf] %v2115
    %2372 = vst [vmem:[#allocation2 + $0x8] sm:$0xf] %v2116
    %2373 = vst [vmem:[#allocation2 + $0xc] sm:$0xf] %v2117
    %2374 = vst [vmem:[#allocation2 + $0x10] sm:$0xf] %v2118
    %2375 = vst [vmem:[#allocation2 + $0x14] sm:$0xf] %v2119
    %2376 = vst [vmem:[#allocation2 + $0x18] sm:$0xf] %v2120
    %2377 = vst [vmem:[#allocation2 + $0x1c] sm:$0xf] %v2121
    %2378 = vst [vmem:[#allocation2 + $0x20] sm:$0xf] %v2122
    %2379 = vst [vmem:[#allocation2 + $0x24] sm:$0xf] %v2123
    %2380 = vst [vmem:[#allocation2 + $0x28] sm:$0xf] %v2124
    %2381 = vst [vmem:[#allocation2 + $0x2c] sm:$0xf] %v2125
    %2382 = vst [vmem:[#allocation2 + $0x30] sm:$0xf] %v2126
    %2383 = vst [vmem:[#allocation2 + $0x34] sm:$0xf] %v2127
    %2384 = vst [vmem:[#allocation2 + $0x38] sm:$0xf] %v2128
    %2385 = vst [vmem:[#allocation2 + $0x3c] sm:$0xf] %v2129
    %2386 = vst [vmem:[#allocation2 + $0x40] sm:$0xf] %v2130
    %2387 = vst [vmem:[#allocation2 + $0x44] sm:$0xf] %v2131
    %2388 = vst [vmem:[#allocation2 + $0x48] sm:$0xf] %v2132
    %2389 = vst [vmem:[#allocation2 + $0x4c] sm:$0xf] %v2133
    %2390 = vst [vmem:[#allocation2 + $0x50] sm:$0xf] %v2134
    %2391 = vst [vmem:[#allocation2 + $0x54] sm:$0xf] %v2135
    %2392 = vst [vmem:[#allocation2 + $0x58] sm:$0xf] %v2136
    %2393 = vst [vmem:[#allocation2 + $0x5c] sm:$0xf] %v2137
    %2394 = vst [vmem:[#allocation2 + $0x60] sm:$0xf] %v2138
    %2395 = vst [vmem:[#allocation2 + $0x64] sm:$0xf] %v2139
    %2396 = vst [vmem:[#allocation2 + $0x68] sm:$0xf] %v2140
    %2397 = vst [vmem:[#allocation2 + $0x6c] sm:$0xf] %v2141
    %2398 = vst [vmem:[#allocation2 + $0x70] sm:$0xf] %v2142
    %2399 = vst [vmem:[#allocation2 + $0x74] sm:$0xf] %v2143
    %2400 = vst [vmem:[#allocation2 + $0x78] sm:$0xf] %v2144
    %2401 = vst [vmem:[#allocation2 + $0x7c] sm:$0xf] %v2145
    %2402 = vst [vmem:[#allocation2 + $0x80] sm:$0xf] %v2146
    %2403 = vst [vmem:[#allocation2 + $0x84] sm:$0xf] %v2147
    %2404 = vst [vmem:[#allocation2 + $0x88] sm:$0xf] %v2148
    %2405 = vst [vmem:[#allocation2 + $0x8c] sm:$0xf] %v2149
    %2406 = vst [vmem:[#allocation2 + $0x90] sm:$0xf] %v2150
    %2407 = vst [vmem:[#allocation2 + $0x94] sm:$0xf] %v2151
    %2408 = vst [vmem:[#allocation2 + $0x98] sm:$0xf] %v2152
    %2409 = vst [vmem:[#allocation2 + $0x9c] sm:$0xf] %v2153
    %2410 = vst [vmem:[#allocation2 + $0xa0] sm:$0xf] %v2154
    %2411 = vst [vmem:[#allocation2 + $0xa4] sm:$0xf] %v2155
    %2412 = vst [vmem:[#allocation2 + $0xa8] sm:$0xf] %v2156
    %2413 = vst [vmem:[#allocation2 + $0xac] sm:$0xf] %v2157
    %2414 = vst [vmem:[#allocation2 + $0xb0] sm:$0xf] %v2158
    %2415 = vst [vmem:[#allocation2 + $0xb4] sm:$0xf] %v2159
    %2416 = vst [vmem:[#allocation2 + $0xb8] sm:$0xf] %v2160
    %2417 = vst [vmem:[#allocation2 + $0xbc] sm:$0xf] %v2161
    %2418 = vst [vmem:[#allocation2 + $0xc0] sm:$0xf] %v2162
    %2419 = vst [vmem:[#allocation2 + $0xc4] sm:$0xf] %v2163
    %2420 = vst [vmem:[#allocation2 + $0xc8] sm:$0xf] %v2164
    %2421 = vst [vmem:[#allocation2 + $0xcc] sm:$0xf] %v2165
    %2422 = vst [vmem:[#allocation2 + $0xd0] sm:$0xf] %v2166
    %2423 = vst [vmem:[#allocation2 + $0xd4] sm:$0xf] %v2167
    %2424 = vst [vmem:[#allocation2 + $0xd8] sm:$0xf] %v2168
    %2425 = vst [vmem:[#allocation2 + $0xdc] sm:$0xf] %v2169
    %2426 = vst [vmem:[#allocation2 + $0xe0] sm:$0xf] %v2170
    %2427 = vst [vmem:[#allocation2 + $0xe4] sm:$0xf] %v2171
    %2428 = vst [vmem:[#allocation2 + $0xe8] sm:$0xf] %v2172
    %2429 = vst [vmem:[#allocation2 + $0xec] sm:$0xf] %v2173
    %2430 = vst [vmem:[#allocation2 + $0xf0] sm:$0xf] %v2174
    %2431 = vst [vmem:[#allocation2 + $0xf4] sm:$0xf] %v2175
    %2432 = vst [vmem:[#allocation2 + $0xf8] sm:$0xf] %v2176
    %2433 = vst [vmem:[#allocation2 + $0xfc] sm:$0xf] %v2177
    %2434 = vst [vmem:[#allocation2 + $0x100] sm:$0xf] %v2178
    %2435 = vst [vmem:[#allocation2 + $0x104] sm:$0xf] %v2179
    %2436 = vst [vmem:[#allocation2 + $0x108] sm:$0xf] %v2180
    %2437 = vst [vmem:[#allocation2 + $0x10c] sm:$0xf] %v2181
    %2438 = vst [vmem:[#allocation2 + $0x110] sm:$0xf] %v2182
    %2439 = vst [vmem:[#allocation2 + $0x114] sm:$0xf] %v2183
    %2440 = vst [vmem:[#allocation2 + $0x118] sm:$0xf] %v2184
    %2441 = vst [vmem:[#allocation2 + $0x11c] sm:$0xf] %v2185
    %2442 = vst [vmem:[#allocation2 + $0x120] sm:$0xf] %v2186
    %2443 = vst [vmem:[#allocation2 + $0x124] sm:$0xf] %v2187
    %2444 = vst [vmem:[#allocation2 + $0x128] sm:$0xf] %v2188
    %2445 = vst [vmem:[#allocation2 + $0x12c] sm:$0xf] %v2189
    %2446 = vst [vmem:[#allocation2 + $0x130] sm:$0xf] %v2190
    %2447 = vst [vmem:[#allocation2 + $0x134] sm:$0xf] %v2191
    %2448 = vst [vmem:[#allocation2 + $0x138] sm:$0xf] %v2192
    %2449 = vst [vmem:[#allocation2 + $0x13c] sm:$0xf] %v2193
    %2450 = vst [vmem:[#allocation2 + $0x140] sm:$0xf] %v2194
    %2451 = vst [vmem:[#allocation2 + $0x144] sm:$0xf] %v2195
    %2452 = vst [vmem:[#allocation2 + $0x148] sm:$0xf] %v2196
    %2453 = vst [vmem:[#allocation2 + $0x14c] sm:$0xf] %v2197
    %2454 = vst [vmem:[#allocation2 + $0x150] sm:$0xf] %v2198
    %2455 = vst [vmem:[#allocation2 + $0x154] sm:$0xf] %v2199
    %2456 = vst [vmem:[#allocation2 + $0x158] sm:$0xf] %v2200
    %2457 = vst [vmem:[#allocation2 + $0x15c] sm:$0xf] %v2201
    %2458 = vst [vmem:[#allocation2 + $0x160] sm:$0xf] %v2202
    %2459 = vst [vmem:[#allocation2 + $0x164] sm:$0xf] %v2203
    %2460 = vst [vmem:[#allocation2 + $0x168] sm:$0xf] %v2204
    %2461 = vst [vmem:[#allocation2 + $0x16c] sm:$0xf] %v2205
    %2462 = vst [vmem:[#allocation2 + $0x170] sm:$0xf] %v2206
    %2463 = vst [vmem:[#allocation2 + $0x174] sm:$0xf] %v2207
    %2464 = vst [vmem:[#allocation2 + $0x178] sm:$0xf] %v2208
    %2465 = vst [vmem:[#allocation2 + $0x17c] sm:$0xf] %v2209
    %2466 = vst [vmem:[#allocation2 + $0x180] sm:$0xf] %v2210
    %2467 = vst [vmem:[#allocation2 + $0x184] sm:$0xf] %v2211
    %2468 = vst [vmem:[#allocation2 + $0x188] sm:$0xf] %v2212
    %2469 = vst [vmem:[#allocation2 + $0x18c] sm:$0xf] %v2213
    %2470 = vst [vmem:[#allocation2 + $0x190] sm:$0xf] %v2214
    %2471 = vst [vmem:[#allocation2 + $0x194] sm:$0xf] %v2215
    %2472 = vst [vmem:[#allocation2 + $0x198] sm:$0xf] %v2216
    %2473 = vst [vmem:[#allocation2 + $0x19c] sm:$0xf] %v2217
    %2474 = vst [vmem:[#allocation2 + $0x1a0] sm:$0xf] %v2218
    %2475 = vst [vmem:[#allocation2 + $0x1a4] sm:$0xf] %v2219
    %2476 = vst [vmem:[#allocation2 + $0x1a8] sm:$0xf] %v2220
    %2477 = vst [vmem:[#allocation2 + $0x1ac] sm:$0xf] %v2221
    %2478 = vst [vmem:[#allocation2 + $0x1b0] sm:$0xf] %v2222
    %2479 = vst [vmem:[#allocation2 + $0x1b4] sm:$0xf] %v2223
    %2480 = vst [vmem:[#allocation2 + $0x1b8] sm:$0xf] %v2224
    %2481 = vst [vmem:[#allocation2 + $0x1bc] sm:$0xf] %v2225
    %2482 = vst [vmem:[#allocation2 + $0x1c0] sm:$0xf] %v2226
    %2483 = vst [vmem:[#allocation2 + $0x1c4] sm:$0xf] %v2227
    %2484 = vst [vmem:[#allocation2 + $0x1c8] sm:$0xf] %v2228
    %2485 = vst [vmem:[#allocation2 + $0x1cc] sm:$0xf] %v2229
    %2486 = vst [vmem:[#allocation2 + $0x1d0] sm:$0xf] %v2230
    %2487 = vst [vmem:[#allocation2 + $0x1d4] sm:$0xf] %v2231
    %2488 = vst [vmem:[#allocation2 + $0x1d8] sm:$0xf] %v2232
    %2489 = vst [vmem:[#allocation2 + $0x1dc] sm:$0xf] %v2233
    %2490 = vst [vmem:[#allocation2 + $0x1e0] sm:$0xf] %v2234
    %2491 = vst [vmem:[#allocation2 + $0x1e4] sm:$0xf] %v2235
    %2492 = vst [vmem:[#allocation2 + $0x1e8] sm:$0xf] %v2236
    %2493 = vst [vmem:[#allocation2 + $0x1ec] sm:$0xf] %v2237
    %2494 = vst [vmem:[#allocation2 + $0x1f0] sm:$0xf] %v2238
    %2495 = vst [vmem:[#allocation2 + $0x1f4] sm:$0xf] %v2239
    %2496 = vst [vmem:[#allocation2 + $0x1f8] sm:$0xf] %v2240
    %2497 = vst [vmem:[#allocation2 + $0x1fc] sm:$0xf] %v2241
    // Predicated region
    $region18: #{conv3d_bn_act.1} parent=1 // pred_check
      _
    $region19: #{conv3d_bn_act.1} parent=1 // pred_check_branch
      %2499 = sbr.rel (0) target = $region21
    $region20: #{conv3d_bn_act.1} parent=1 // pred_region
      %s2501 = ssub.s32 8192, 8192
      %2502 = vsyncadd [#allocation3], %s2501
      %s2503 = sshll.u32 [#allocation2], 4
      %s2504 = int_to_ptr.vmem [resolvable:$true] %s2503
      %2509 = dma.vmem_to_hbm [thread:$0]  %s2504, 8192, %s4, [#allocation3], 64, 64, 4
    $region21: #{conv3d_bn_act.1} parent=1 // pred_fallthru
      _
    // Predicated region
    $region22: #{conv3d_bn_act.1} parent=1 // pred_check
      _
    $region23: #{conv3d_bn_act.1} parent=1 // pred_check_branch
      %2511 = sbr.rel (0) target = $region25
    $region24: #{conv3d_bn_act.1} parent=1 // pred_region
      %2512 = dma.done [#allocation3], 8192
    $region25: #{conv3d_bn_act.1} parent=1 // pred_fallthru
      _
    %2513 = vsyncpa [#allocation3], 1

</llo_original>
